<compile_context>
chip_gen: v5e
topology: v5e:2x2
jax: 0.10.0
libtpu: 0.0.40
codegen_flags: <defaults>
</compile_context>

<pallas_src>
import functools

import jax
import jax.numpy as jnp
from jax import lax
from jax.experimental import pallas as pl
from jax.experimental.pallas import tpu as pltpu


def _elu(y):
    """ELU(alpha=1).  expm1(t) = 2*tanh(t/2) / (1 - tanh(t/2)).

    Accurate for small |t| (no cancellation like exp(t)-1); tanh runs on the
    EUP slot.  (pl.reciprocal(1-t, approx=True) could replace the divide on
    v5e at the cost of ~1e-3 relative error; kept exact for validation.)
    """
    yn = jnp.minimum(y, 0.0)
    t = jnp.tanh(0.5 * yn)
    em1 = (2.0 * t) / (1.0 - t)
    return jnp.where(y > 0.0, y, em1)


def basic_block_kernel(x_ref, w1_ref, g1_ref, be1_ref, w2_ref, g2_ref, be2_ref,
                       cmask_ref, o_ref, xp_ref, b_ref, *, width, margin):
    """Fused BasicBlock forward, channel-on-sublane / pixels-on-lane layout.

    x_ref    : (N, CP, L)       input, channel-padded, flat pixels on lanes, MXU dtype
    w*_ref   : (Cout, 9*CP)     im2col weights (tap-major, channel zero-padded), MXU dtype
    g*/be*   : (Cout, 1)        BN gamma / beta, f32
    cmask_ref: (3, L)           per-dx column-validity mask {0,1}, MXU dtype
    o_ref    : (N, Cout, L)     output, f32 (lane-dense)
    xp_ref   : (N, CP, BUFLEN)  zero-margined flat activation buffer (reused by
                                both stages), MXU dtype
    b_ref    : (9*CP, N*L)      im2col operand, MXU dtype
    """
    N, _, L = x_ref.shape
    Cout = w1_ref.shape[0]
    CP = xp_ref.shape[1]
    W, M = width, margin
    inv_count = 1.0 / float(N * L)

    # Zero the flat buffer once.  This realizes the conv zero-padding (the
    # row halo lives in the margins, the column halo via cmask) and the
    # unused channel rows; it is a handful of dense full-lane splat stores,
    # not the old 80%-overwritten (N,H+2,W+2,C) f32 fills.
    xp_ref[...] = jnp.zeros(xp_ref.shape, xp_ref.dtype)

    # Stage the input: one dense, lane-aligned (CP, L) store per image.
    for n in range(N):
        xp_ref[n, :, M:M + L] = x_ref[n]

    def conv_bn_elu(wm_ref, g_ref, be_ref, park, read, write):
        # --- im2col: each 3x3 tap is a constant lane shift of the flat
        #     buffer; out-of-row columns are zeroed by a {0,1} mask. --------
        for t in range(9):
            dy, dx = divmod(t, 3)
            s = (dy - 1) * W + (dx - 1)
            for n in range(N):
                blk = xp_ref[n, :, M + s:M + s + L]          # (CP, L)
                if dx != 1:
                    blk = blk * cmask_ref[dx:dx + 1, :]
                b_ref[t * CP:(t + 1) * CP, n * L:(n + 1) * L] = blk

        # --- one MXU contraction for the whole batch. ----------------------
        r = jnp.dot(wm_ref[...], b_ref[...],
                    preferred_element_type=jnp.float32)      # (Cout, N*L) f32
        ssum = jnp.sum(r, axis=1, keepdims=True)             # (Cout, 1)
        for n in range(N):
            park(n, r[:, n * L:(n + 1) * L])                 # pre-BN result parked
        mean = ssum * inv_count

        # --- centered (two-pass) variance over the parked conv output. -----
        vsum = jnp.zeros((Cout, 1), jnp.float32)
        for n in range(N):
            d = read(n) - mean
            vsum = vsum + jnp.sum(d * d, axis=1, keepdims=True)
        var = vsum * inv_count
        scale = g_ref[...] * lax.rsqrt(var + 1e-5)           # (Cout, 1)
        shift = be_ref[...] - mean * scale

        # --- normalize + ELU, written back in place. ------------------------
        for n in range(N):
            write(n, _elu(read(n) * scale + shift))

    # Stage 1: park / normalize directly inside the reused flat buffer, so
    # the intermediate activation never leaves VMEM and needs no extra scratch.
    def s1_park(n, v):
        xp_ref[n, 0:Cout, M:M + L] = v.astype(xp_ref.dtype)

    def s1_read(n):
        return xp_ref[n, 0:Cout, M:M + L].astype(jnp.float32)

    conv_bn_elu(w1_ref, g1_ref, be1_ref, s1_park, s1_read, s1_park)

    # If the buffer has more channel rows than stage-1 outputs (Cin > Cout),
    # clear the stale input rows so stage 2 contracts against zeros there.
    if Cout < CP:
        for n in range(N):
            xp_ref[n, Cout:CP, M:M + L] = jnp.zeros((CP - Cout, L),
                                                    xp_ref.dtype)

    # Stage 2: park / normalize directly in the (f32, lane-dense) output ref.
    def s2_park(n, v):
        o_ref[n, :, :] = v

    def s2_read(n):
        return o_ref[n, :, :]

    conv_bn_elu(w2_ref, g2_ref, be2_ref, s2_park, s2_read, s2_park)


def _round_up(v, m):
    return ((v + m - 1) // m) * m


def _vmem_capacity_bytes():
    """Per-core VMEM capacity; falls back to the smallest current part (v7x)."""
    try:
        info = pltpu.get_tpu_info()
        cap = getattr(info, "vmem_capacity_bytes", None)
        if cap:
            return int(cap)
    except Exception:
        pass
    return 64 * 2 ** 20


def _im2col_weight(w_hwio, cin, cout, cp, dtype):
    """(3,3,Cin,Cout) HWIO -> (Cout, 9*CP), tap-major, channel zero-padded."""
    wt = jnp.transpose(w_hwio, (3, 0, 1, 2))                 # (Cout, 3, 3, Cin)
    wt = jnp.pad(wt, ((0, 0), (0, 0), (0, 0), (0, cp - cin)))
    return wt.reshape(cout, 9 * cp).astype(dtype)


def _basic_block_pallas(x_nchw, w1, g1, be1, w2, g2, be2, mxu_dtype):
    N, Cin, H, W = x_nchw.shape
    Cout = w1.shape[-1]
    L = H * W
    CP = max(Cin, Cout)                       # buffer / contraction channel count
    M = _round_up(W + 1, 128)                 # zero margin; data starts lane-aligned
    BUFLEN = M + _round_up(L + W + 1, 128)    # margin + flat image + row-halo tail

    itb = jnp.dtype(mxu_dtype).itemsize
    f32b = 4
    sub = lambda c: _round_up(max(c, 1), 8)
    lan = lambda l: _round_up(max(l, 1), 128)
    need = (N * sub(CP) * lan(BUFLEN) * itb            # flat activation buffer
            + sub(9 * CP) * lan(N * L) * itb           # im2col operand
            + N * sub(CP) * lan(L) * itb               # x
            + N * sub(Cout) * lan(L) * f32b            # out
            + 2 * sub(Cout) * lan(9 * CP) * itb        # weights
            + sub(3) * lan(L) * itb                    # column mask
            + 4 * sub(Cout) * 128 * f32b)              # gamma/beta
    cap = _vmem_capacity_bytes()
    if need > (3 * cap) // 4:
        raise ValueError(
            "BasicBlock too large for the fused single-invocation kernel on "
            f"this TPU (~{need} B needed, {cap} B VMEM); tile over H with a "
            "gridded cross-tile BatchNorm instead.")
    vmem_limit = int(min((3 * cap) // 4, max(2 * need, 8 * 2 ** 20)))

    cost = pl.CostEstimate(
        flops=2 * N * L * 9 * Cout * (Cin + Cout),
        transcendentals=2 * N * L * Cout,
        bytes_accessed=(N * L * Cin * itb + 2 * 9 * CP * Cout * itb
                        + N * L * Cout * f32b),
    )

    # Channel-major, lane-dense operands.  The input is only reshaped and
    # channel-padded (tiny), never spatially padded or transposed in HBM.
    x_flat = jnp.pad(x_nchw.astype(mxu_dtype).reshape(N, Cin, L),
                     ((0, 0), (0, CP - Cin), (0, 0)))
    w1m = _im2col_weight(w1, Cin, Cout, CP, mxu_dtype)
    w2m = _im2col_weight(w2, Cout, Cout, CP, mxu_dtype)
    wpos = jnp.arange(L, dtype=jnp.int32) % W
    cmask = jnp.stack(
        [((wpos + dx - 1 >= 0) & (wpos + dx - 1 < W)) for dx in range(3)]
    ).astype(mxu_dtype)                                      # (3, L)

    kernel = functools.partial(basic_block_kernel, width=W, margin=M)
    out_flat = pl.pallas_call(
        kernel,
        out_shape=jax.ShapeDtypeStruct((N, Cout, L), jnp.float32),
        in_specs=[pl.BlockSpec(memory_space=pltpu.MemorySpace.VMEM)] * 8,
        out_specs=pl.BlockSpec(memory_space=pltpu.MemorySpace.VMEM),
        scratch_shapes=[
            pltpu.VMEM((N, CP, BUFLEN), mxu_dtype),          # flat activation buffer
            pltpu.VMEM((9 * CP, N * L), mxu_dtype),          # im2col operand
        ],
        compiler_params=pltpu.CompilerParams(vmem_limit_bytes=vmem_limit),
        cost_estimate=cost,
    )(x_flat, w1m, g1.reshape(Cout, 1), be1.reshape(Cout, 1),
      w2m, g2.reshape(Cout, 1), be2.reshape(Cout, 1), cmask)

    return out_flat.reshape(N, Cout, H, W)   # pure reshape: no transpose pass


def init_basic_block_params(key, in_channels, out_channels):
    """Deterministic init mirroring PyTorch defaults (uniform conv, BN=1/0)."""
    k1, k2, k3, k4 = jax.random.split(key, 4)
    bound1 = 1.0 / jnp.sqrt(in_channels * 9)
    bound2 = 1.0 / jnp.sqrt(out_channels * 9)
    w1_oihw = jax.random.uniform(k1, (out_channels, in_channels, 3, 3),
                                 jnp.float32, -bound1, bound1)
    b1 = jax.random.uniform(k2, (out_channels,), jnp.float32, -bound1, bound1)
    w2_oihw = jax.random.uniform(k3, (out_channels, out_channels, 3, 3),
                                 jnp.float32, -bound2, bound2)
    b2 = jax.random.uniform(k4, (out_channels,), jnp.float32, -bound2, bound2)
    return {
        "w1": jnp.transpose(w1_oihw, (2, 3, 1, 0)),   # OIHW -> HWIO
        "b1": b1,
        "g1": jnp.ones((out_channels,), jnp.float32),
        "be1": jnp.zeros((out_channels,), jnp.float32),
        "w2": jnp.transpose(w2_oihw, (2, 3, 1, 0)),   # OIHW -> HWIO
        "b2": b2,
        "g2": jnp.ones((out_channels,), jnp.float32),
        "be2": jnp.zeros((out_channels,), jnp.float32),
    }


@functools.partial(jax.jit, static_argnames=("mxu_dtype",))
def basic_block_forward(x_nchw, params, mxu_dtype=jnp.bfloat16):
    # NCHW in, NCHW out; the kernel works channel-major so no transposes.
    # b1/b2 are intentionally NOT passed: training-mode BN absorbs a
    # per-channel constant shift exactly (the reference keeps them).
    return _basic_block_pallas(
        x_nchw, params["w1"], params["g1"], params["be1"],
        params["w2"], params["g2"], params["be2"], mxu_dtype)


def _reference_forward(x_nchw, params, mxu_dtype=jnp.bfloat16):
    """Plain-JAX reference (conv+bias, batch-stat BN, ELU) for validation."""
    def block(x, w, b, g, be):
        y = lax.conv_general_dilated(
            x.astype(mxu_dtype), w.astype(mxu_dtype),
            window_strides=(1, 1), padding=((1, 1), (1, 1)),
            dimension_numbers=("NHWC", "HWIO", "NHWC"),
            preferred_element_type=jnp.float32)
        y = y + b.reshape(1, 1, 1, -1)
        mean = jnp.mean(y, axis=(0, 1, 2), keepdims=True)
        var = jnp.mean((y - mean) ** 2, axis=(0, 1, 2), keepdims=True)
        y = (y - mean) * lax.rsqrt(var + 1e-5)
        y = y * g.reshape(1, 1, 1, -1) + be.reshape(1, 1, 1, -1)
        return jnp.where(y > 0, y, jnp.expm1(y))

    x = jnp.transpose(x_nchw, (0, 2, 3, 1))
    c = block(x, params["w1"], params["b1"], params["g1"], params["be1"])
    c = block(c, params["w2"], params["b2"], params["g2"], params["be2"])
    return jnp.transpose(c, (0, 3, 1, 2))


if __name__ == "__main__":
    key = jax.random.PRNGKey(0)
    k_x, k_p = jax.random.split(key)

    N, Cin, Cout, H, W = 2, 4, 8, 16, 16
    x = jax.random.normal(k_x, (N, Cin, H, W), jnp.float32)   # NCHW like torch
    params = init_basic_block_params(k_p, Cin, Cout)

    # f32-fed MXU path: tight comparison against the f32 reference.
    out_f32 = jax.block_until_ready(
        basic_block_forward(x, params, mxu_dtype=jnp.float32))
    ref_f32 = _reference_forward(x, params, mxu_dtype=jnp.float32)
    assert out_f32.shape == (N, Cout, H, W)
    assert jnp.allclose(out_f32, ref_f32, rtol=2e-4, atol=2e-4), "f32 mismatch"

    # bf16-fed MXU path (default, production): the kernel additionally parks
    # the stage-1 pre-BN activation in bf16 (a rounding point the reference
    # does not have), hence the slightly looser tolerance.
    out_bf16 = jax.block_until_ready(basic_block_forward(x, params))
    ref_bf16 = _reference_forward(x, params, mxu_dtype=jnp.bfloat16)
    assert out_bf16.shape == (N, Cout, H, W)
    assert jnp.allclose(out_bf16, ref_bf16, rtol=3e-2, atol=3e-2), "bf16 mismatch"

    print("KERNEL_OK")
</pallas_src>

<mosaic_0001>
module attributes {stable_mosaic.version = 11 : i64} {
  func.func @basic_block_kernel(%arg0: memref<2x8x256xf32, #tpu.memory_space<vmem>>, %arg1: memref<8x72xf32, #tpu.memory_space<vmem>>, %arg2: memref<8x1xf32, #tpu.memory_space<vmem>>, %arg3: memref<8x1xf32, #tpu.memory_space<vmem>>, %arg4: memref<8x72xf32, #tpu.memory_space<vmem>>, %arg5: memref<8x1xf32, #tpu.memory_space<vmem>>, %arg6: memref<8x1xf32, #tpu.memory_space<vmem>>, %arg7: memref<3x256xf32, #tpu.memory_space<vmem>>, %arg8: memref<2x8x256xf32, #tpu.memory_space<vmem>>, %arg9: memref<2x8x512xf32, #tpu.memory_space<vmem>>, %arg10: memref<72x512xf32, #tpu.memory_space<vmem>>) attributes {dimension_semantics = [], scalar_prefetch = 0 : i64, scratch_operands = 2 : i64, tpu.core_type = #tpu.core_type<tc>} {
    %cst = arith.constant 0.000000e+00 : f32
    %0 = vector.broadcast %cst : f32 to vector<2x8x512xf32>
    %c0 = arith.constant 0 : index
    %c0_0 = arith.constant 0 : index
    %c0_1 = arith.constant 0 : index
    %1 = vector.load %arg9[%c0, %c0_0, %c0_1] : memref<2x8x512xf32, #tpu.memory_space<vmem>>, vector<2x8x512xf32>
    tpu.vector_store %arg9[%c0, %c0_0, %c0_1], %0 {strides = array<i32>} : memref<2x8x512xf32, #tpu.memory_space<vmem>>, vector<2x8x512xf32>,
    %c0_2 = arith.constant 0 : index
    %c0_3 = arith.constant 0 : index
    %c0_4 = arith.constant 0 : index
    %2 = vector.load %arg0[%c0_2, %c0_3, %c0_4] : memref<2x8x256xf32, #tpu.memory_space<vmem>>, vector<1x8x256xf32>
    %3 = vector.shape_cast %2 : vector<1x8x256xf32> to vector<8x256xf32>
    %c0_5 = arith.constant 0 : index
    %c0_6 = arith.constant 0 : index
    %c128 = arith.constant 128 : index
    %4 = vector.load %arg9[%c0_5, %c0_6, %c128] : memref<2x8x512xf32, #tpu.memory_space<vmem>>, vector<1x8x256xf32>
    %5 = vector.shape_cast %4 : vector<1x8x256xf32> to vector<8x256xf32>
    %6 = vector.shape_cast %3 : vector<8x256xf32> to vector<1x8x256xf32>
    tpu.vector_store %arg9[%c0_5, %c0_6, %c128], %6 {strides = array<i32>} : memref<2x8x512xf32, #tpu.memory_space<vmem>>, vector<1x8x256xf32>,
    %c1 = arith.constant 1 : index
    %c0_7 = arith.constant 0 : index
    %c0_8 = arith.constant 0 : index
    %7 = vector.load %arg0[%c1, %c0_7, %c0_8] : memref<2x8x256xf32, #tpu.memory_space<vmem>>, vector<1x8x256xf32>
    %8 = vector.shape_cast %7 : vector<1x8x256xf32> to vector<8x256xf32>
    %c1_9 = arith.constant 1 : index
    %c0_10 = arith.constant 0 : index
    %c128_11 = arith.constant 128 : index
    %9 = vector.load %arg9[%c1_9, %c0_10, %c128_11] : memref<2x8x512xf32, #tpu.memory_space<vmem>>, vector<1x8x256xf32>
    %10 = vector.shape_cast %9 : vector<1x8x256xf32> to vector<8x256xf32>
    %11 = vector.shape_cast %8 : vector<8x256xf32> to vector<1x8x256xf32>
    tpu.vector_store %arg9[%c1_9, %c0_10, %c128_11], %11 {strides = array<i32>} : memref<2x8x512xf32, #tpu.memory_space<vmem>>, vector<1x8x256xf32>,
    %c0_12 = arith.constant 0 : index
    %c0_13 = arith.constant 0 : index
    %c111 = arith.constant 111 : index
    %12 = vector.load %arg9[%c0_12, %c0_13, %c111] : memref<2x8x512xf32, #tpu.memory_space<vmem>>, vector<1x8x256xf32>
    %13 = vector.shape_cast %12 : vector<1x8x256xf32> to vector<8x256xf32>
    %c0_14 = arith.constant 0 : index
    %c0_15 = arith.constant 0 : index
    %14 = vector.load %arg7[%c0_14, %c0_15] : memref<3x256xf32, #tpu.memory_space<vmem>>, vector<1x256xf32>
    %15 = vector.broadcast %14 : vector<1x256xf32> to vector<8x256xf32>
    %16 = arith.mulf %13, %15 : vector<8x256xf32>
    %c0_16 = arith.constant 0 : index
    %c0_17 = arith.constant 0 : index
    %17 = vector.load %arg10[%c0_16, %c0_17] : memref<72x512xf32, #tpu.memory_space<vmem>>, vector<8x256xf32>
    tpu.vector_store %arg10[%c0_16, %c0_17], %16 {strides = array<i32>} : memref<72x512xf32, #tpu.memory_space<vmem>>, vector<8x256xf32>,
    %c1_18 = arith.constant 1 : index
    %c0_19 = arith.constant 0 : index
    %c111_20 = arith.constant 111 : index
    %18 = vector.load %arg9[%c1_18, %c0_19, %c111_20] : memref<2x8x512xf32, #tpu.memory_space<vmem>>, vector<1x8x256xf32>
    %19 = vector.shape_cast %18 : vector<1x8x256xf32> to vector<8x256xf32>
    %c0_21 = arith.constant 0 : index
    %c0_22 = arith.constant 0 : index
    %20 = vector.load %arg7[%c0_21, %c0_22] : memref<3x256xf32, #tpu.memory_space<vmem>>, vector<1x256xf32>
    %21 = vector.broadcast %20 : vector<1x256xf32> to vector<8x256xf32>
    %22 = arith.mulf %19, %21 : vector<8x256xf32>
    %c0_23 = arith.constant 0 : index
    %c256 = arith.constant 256 : index
    %23 = vector.load %arg10[%c0_23, %c256] : memref<72x512xf32, #tpu.memory_space<vmem>>, vector<8x256xf32>
    tpu.vector_store %arg10[%c0_23, %c256], %22 {strides = array<i32>} : memref<72x512xf32, #tpu.memory_space<vmem>>, vector<8x256xf32>,
    %c0_24 = arith.constant 0 : index
    %c0_25 = arith.constant 0 : index
    %c112 = arith.constant 112 : index
    %24 = vector.load %arg9[%c0_24, %c0_25, %c112] : memref<2x8x512xf32, #tpu.memory_space<vmem>>, vector<1x8x256xf32>
    %25 = vector.shape_cast %24 : vector<1x8x256xf32> to vector<8x256xf32>
    %c8 = arith.constant 8 : index
    %c0_26 = arith.constant 0 : index
    %26 = vector.load %arg10[%c8, %c0_26] : memref<72x512xf32, #tpu.memory_space<vmem>>, vector<8x256xf32>
    tpu.vector_store %arg10[%c8, %c0_26], %25 {strides = array<i32>} : memref<72x512xf32, #tpu.memory_space<vmem>>, vector<8x256xf32>,
    %c1_27 = arith.constant 1 : index
    %c0_28 = arith.constant 0 : index
    %c112_29 = arith.constant 112 : index
    %27 = vector.load %arg9[%c1_27, %c0_28, %c112_29] : memref<2x8x512xf32, #tpu.memory_space<vmem>>, vector<1x8x256xf32>
    %28 = vector.shape_cast %27 : vector<1x8x256xf32> to vector<8x256xf32>
    %c8_30 = arith.constant 8 : index
    %c256_31 = arith.constant 256 : index
    %29 = vector.load %arg10[%c8_30, %c256_31] : memref<72x512xf32, #tpu.memory_space<vmem>>, vector<8x256xf32>
    tpu.vector_store %arg10[%c8_30, %c256_31], %28 {strides = array<i32>} : memref<72x512xf32, #tpu.memory_space<vmem>>, vector<8x256xf32>,
    %c0_32 = arith.constant 0 : index
    %c0_33 = arith.constant 0 : index
    %c113 = arith.constant 113 : index
    %30 = vector.load %arg9[%c0_32, %c0_33, %c113] : memref<2x8x512xf32, #tpu.memory_space<vmem>>, vector<1x8x256xf32>
    %31 = vector.shape_cast %30 : vector<1x8x256xf32> to vector<8x256xf32>
    %c2 = arith.constant 2 : index
    %c0_34 = arith.constant 0 : index
    %32 = vector.load %arg7[%c2, %c0_34] : memref<3x256xf32, #tpu.memory_space<vmem>>, vector<1x256xf32>
    %33 = vector.broadcast %32 : vector<1x256xf32> to vector<8x256xf32>
    %34 = arith.mulf %31, %33 : vector<8x256xf32>
    %c16 = arith.constant 16 : index
    %c0_35 = arith.constant 0 : index
    %35 = vector.load %arg10[%c16, %c0_35] : memref<72x512xf32, #tpu.memory_space<vmem>>, vector<8x256xf32>
    tpu.vector_store %arg10[%c16, %c0_35], %34 {strides = array<i32>} : memref<72x512xf32, #tpu.memory_space<vmem>>, vector<8x256xf32>,
    %c1_36 = arith.constant 1 : index
    %c0_37 = arith.constant 0 : index
    %c113_38 = arith.constant 113 : index
    %36 = vector.load %arg9[%c1_36, %c0_37, %c113_38] : memref<2x8x512xf32, #tpu.memory_space<vmem>>, vector<1x8x256xf32>
    %37 = vector.shape_cast %36 : vector<1x8x256xf32> to vector<8x256xf32>
    %c2_39 = arith.constant 2 : index
    %c0_40 = arith.constant 0 : index
    %38 = vector.load %arg7[%c2_39, %c0_40] : memref<3x256xf32, #tpu.memory_space<vmem>>, vector<1x256xf32>
    %39 = vector.broadcast %38 : vector<1x256xf32> to vector<8x256xf32>
    %40 = arith.mulf %37, %39 : vector<8x256xf32>
    %c16_41 = arith.constant 16 : index
    %c256_42 = arith.constant 256 : index
    %41 = vector.load %arg10[%c16_41, %c256_42] : memref<72x512xf32, #tpu.memory_space<vmem>>, vector<8x256xf32>
    tpu.vector_store %arg10[%c16_41, %c256_42], %40 {strides = array<i32>} : memref<72x512xf32, #tpu.memory_space<vmem>>, vector<8x256xf32>,
    %c0_43 = arith.constant 0 : index
    %c0_44 = arith.constant 0 : index
    %c127 = arith.constant 127 : index
    %42 = vector.load %arg9[%c0_43, %c0_44, %c127] : memref<2x8x512xf32, #tpu.memory_space<vmem>>, vector<1x8x256xf32>
    %43 = vector.shape_cast %42 : vector<1x8x256xf32> to vector<8x256xf32>
    %c0_45 = arith.constant 0 : index
    %c0_46 = arith.constant 0 : index
    %44 = vector.load %arg7[%c0_45, %c0_46] : memref<3x256xf32, #tpu.memory_space<vmem>>, vector<1x256xf32>
    %45 = vector.broadcast %44 : vector<1x256xf32> to vector<8x256xf32>
    %46 = arith.mulf %43, %45 : vector<8x256xf32>
    %c24 = arith.constant 24 : index
    %c0_47 = arith.constant 0 : index
    %47 = vector.load %arg10[%c24, %c0_47] : memref<72x512xf32, #tpu.memory_space<vmem>>, vector<8x256xf32>
    tpu.vector_store %arg10[%c24, %c0_47], %46 {strides = array<i32>} : memref<72x512xf32, #tpu.memory_space<vmem>>, vector<8x256xf32>,
    %c1_48 = arith.constant 1 : index
    %c0_49 = arith.constant 0 : index
    %c127_50 = arith.constant 127 : index
    %48 = vector.load %arg9[%c1_48, %c0_49, %c127_50] : memref<2x8x512xf32, #tpu.memory_space<vmem>>, vector<1x8x256xf32>
    %49 = vector.shape_cast %48 : vector<1x8x256xf32> to vector<8x256xf32>
    %c0_51 = arith.constant 0 : index
    %c0_52 = arith.constant 0 : index
    %50 = vector.load %arg7[%c0_51, %c0_52] : memref<3x256xf32, #tpu.memory_space<vmem>>, vector<1x256xf32>
    %51 = vector.broadcast %50 : vector<1x256xf32> to vector<8x256xf32>
    %52 = arith.mulf %49, %51 : vector<8x256xf32>
    %c24_53 = arith.constant 24 : index
    %c256_54 = arith.constant 256 : index
    %53 = vector.load %arg10[%c24_53, %c256_54] : memref<72x512xf32, #tpu.memory_space<vmem>>, vector<8x256xf32>
    tpu.vector_store %arg10[%c24_53, %c256_54], %52 {strides = array<i32>} : memref<72x512xf32, #tpu.memory_space<vmem>>, vector<8x256xf32>,
    %c0_55 = arith.constant 0 : index
    %c0_56 = arith.constant 0 : index
    %c128_57 = arith.constant 128 : index
    %54 = vector.load %arg9[%c0_55, %c0_56, %c128_57] : memref<2x8x512xf32, #tpu.memory_space<vmem>>, vector<1x8x256xf32>
    %55 = vector.shape_cast %54 : vector<1x8x256xf32> to vector<8x256xf32>
    %c32 = arith.constant 32 : index
    %c0_58 = arith.constant 0 : index
    %56 = vector.load %arg10[%c32, %c0_58] : memref<72x512xf32, #tpu.memory_space<vmem>>, vector<8x256xf32>
    tpu.vector_store %arg10[%c32, %c0_58], %55 {strides = array<i32>} : memref<72x512xf32, #tpu.memory_space<vmem>>, vector<8x256xf32>,
    %c1_59 = arith.constant 1 : index
    %c0_60 = arith.constant 0 : index
    %c128_61 = arith.constant 128 : index
    %57 = vector.load %arg9[%c1_59, %c0_60, %c128_61] : memref<2x8x512xf32, #tpu.memory_space<vmem>>, vector<1x8x256xf32>
    %58 = vector.shape_cast %57 : vector<1x8x256xf32> to vector<8x256xf32>
    %c32_62 = arith.constant 32 : index
    %c256_63 = arith.constant 256 : index
    %59 = vector.load %arg10[%c32_62, %c256_63] : memref<72x512xf32, #tpu.memory_space<vmem>>, vector<8x256xf32>
    tpu.vector_store %arg10[%c32_62, %c256_63], %58 {strides = array<i32>} : memref<72x512xf32, #tpu.memory_space<vmem>>, vector<8x256xf32>,
    %c0_64 = arith.constant 0 : index
    %c0_65 = arith.constant 0 : index
    %c129 = arith.constant 129 : index
    %60 = vector.load %arg9[%c0_64, %c0_65, %c129] : memref<2x8x512xf32, #tpu.memory_space<vmem>>, vector<1x8x256xf32>
    %61 = vector.shape_cast %60 : vector<1x8x256xf32> to vector<8x256xf32>
    %c2_66 = arith.constant 2 : index
    %c0_67 = arith.constant 0 : index
    %62 = vector.load %arg7[%c2_66, %c0_67] : memref<3x256xf32, #tpu.memory_space<vmem>>, vector<1x256xf32>
    %63 = vector.broadcast %62 : vector<1x256xf32> to vector<8x256xf32>
    %64 = arith.mulf %61, %63 : vector<8x256xf32>
    %c40 = arith.constant 40 : index
    %c0_68 = arith.constant 0 : index
    %65 = vector.load %arg10[%c40, %c0_68] : memref<72x512xf32, #tpu.memory_space<vmem>>, vector<8x256xf32>
    tpu.vector_store %arg10[%c40, %c0_68], %64 {strides = array<i32>} : memref<72x512xf32, #tpu.memory_space<vmem>>, vector<8x256xf32>,
    %c1_69 = arith.constant 1 : index
    %c0_70 = arith.constant 0 : index
    %c129_71 = arith.constant 129 : index
    %66 = vector.load %arg9[%c1_69, %c0_70, %c129_71] : memref<2x8x512xf32, #tpu.memory_space<vmem>>, vector<1x8x256xf32>
    %67 = vector.shape_cast %66 : vector<1x8x256xf32> to vector<8x256xf32>
    %c2_72 = arith.constant 2 : index
    %c0_73 = arith.constant 0 : index
    %68 = vector.load %arg7[%c2_72, %c0_73] : memref<3x256xf32, #tpu.memory_space<vmem>>, vector<1x256xf32>
    %69 = vector.broadcast %68 : vector<1x256xf32> to vector<8x256xf32>
    %70 = arith.mulf %67, %69 : vector<8x256xf32>
    %c40_74 = arith.constant 40 : index
    %c256_75 = arith.constant 256 : index
    %71 = vector.load %arg10[%c40_74, %c256_75] : memref<72x512xf32, #tpu.memory_space<vmem>>, vector<8x256xf32>
    tpu.vector_store %arg10[%c40_74, %c256_75], %70 {strides = array<i32>} : memref<72x512xf32, #tpu.memory_space<vmem>>, vector<8x256xf32>,
    %c0_76 = arith.constant 0 : index
    %c0_77 = arith.constant 0 : index
    %c143 = arith.constant 143 : index
    %72 = vector.load %arg9[%c0_76, %c0_77, %c143] : memref<2x8x512xf32, #tpu.memory_space<vmem>>, vector<1x8x256xf32>
    %73 = vector.shape_cast %72 : vector<1x8x256xf32> to vector<8x256xf32>
    %c0_78 = arith.constant 0 : index
    %c0_79 = arith.constant 0 : index
    %74 = vector.load %arg7[%c0_78, %c0_79] : memref<3x256xf32, #tpu.memory_space<vmem>>, vector<1x256xf32>
    %75 = vector.broadcast %74 : vector<1x256xf32> to vector<8x256xf32>
    %76 = arith.mulf %73, %75 : vector<8x256xf32>
    %c48 = arith.constant 48 : index
    %c0_80 = arith.constant 0 : index
    %77 = vector.load %arg10[%c48, %c0_80] : memref<72x512xf32, #tpu.memory_space<vmem>>, vector<8x256xf32>
    tpu.vector_store %arg10[%c48, %c0_80], %76 {strides = array<i32>} : memref<72x512xf32, #tpu.memory_space<vmem>>, vector<8x256xf32>,
    %c1_81 = arith.constant 1 : index
    %c0_82 = arith.constant 0 : index
    %c143_83 = arith.constant 143 : index
    %78 = vector.load %arg9[%c1_81, %c0_82, %c143_83] : memref<2x8x512xf32, #tpu.memory_space<vmem>>, vector<1x8x256xf32>
    %79 = vector.shape_cast %78 : vector<1x8x256xf32> to vector<8x256xf32>
    %c0_84 = arith.constant 0 : index
    %c0_85 = arith.constant 0 : index
    %80 = vector.load %arg7[%c0_84, %c0_85] : memref<3x256xf32, #tpu.memory_space<vmem>>, vector<1x256xf32>
    %81 = vector.broadcast %80 : vector<1x256xf32> to vector<8x256xf32>
    %82 = arith.mulf %79, %81 : vector<8x256xf32>
    %c48_86 = arith.constant 48 : index
    %c256_87 = arith.constant 256 : index
    %83 = vector.load %arg10[%c48_86, %c256_87] : memref<72x512xf32, #tpu.memory_space<vmem>>, vector<8x256xf32>
    tpu.vector_store %arg10[%c48_86, %c256_87], %82 {strides = array<i32>} : memref<72x512xf32, #tpu.memory_space<vmem>>, vector<8x256xf32>,
    %c0_88 = arith.constant 0 : index
    %c0_89 = arith.constant 0 : index
    %c144 = arith.constant 144 : index
    %84 = vector.load %arg9[%c0_88, %c0_89, %c144] : memref<2x8x512xf32, #tpu.memory_space<vmem>>, vector<1x8x256xf32>
    %85 = vector.shape_cast %84 : vector<1x8x256xf32> to vector<8x256xf32>
    %c56 = arith.constant 56 : index
    %c0_90 = arith.constant 0 : index
    %86 = vector.load %arg10[%c56, %c0_90] : memref<72x512xf32, #tpu.memory_space<vmem>>, vector<8x256xf32>
    tpu.vector_store %arg10[%c56, %c0_90], %85 {strides = array<i32>} : memref<72x512xf32, #tpu.memory_space<vmem>>, vector<8x256xf32>,
    %c1_91 = arith.constant 1 : index
    %c0_92 = arith.constant 0 : index
    %c144_93 = arith.constant 144 : index
    %87 = vector.load %arg9[%c1_91, %c0_92, %c144_93] : memref<2x8x512xf32, #tpu.memory_space<vmem>>, vector<1x8x256xf32>
    %88 = vector.shape_cast %87 : vector<1x8x256xf32> to vector<8x256xf32>
    %c56_94 = arith.constant 56 : index
    %c256_95 = arith.constant 256 : index
    %89 = vector.load %arg10[%c56_94, %c256_95] : memref<72x512xf32, #tpu.memory_space<vmem>>, vector<8x256xf32>
    tpu.vector_store %arg10[%c56_94, %c256_95], %88 {strides = array<i32>} : memref<72x512xf32, #tpu.memory_space<vmem>>, vector<8x256xf32>,
    %c0_96 = arith.constant 0 : index
    %c0_97 = arith.constant 0 : index
    %c145 = arith.constant 145 : index
    %90 = vector.load %arg9[%c0_96, %c0_97, %c145] : memref<2x8x512xf32, #tpu.memory_space<vmem>>, vector<1x8x256xf32>
    %91 = vector.shape_cast %90 : vector<1x8x256xf32> to vector<8x256xf32>
    %c2_98 = arith.constant 2 : index
    %c0_99 = arith.constant 0 : index
    %92 = vector.load %arg7[%c2_98, %c0_99] : memref<3x256xf32, #tpu.memory_space<vmem>>, vector<1x256xf32>
    %93 = vector.broadcast %92 : vector<1x256xf32> to vector<8x256xf32>
    %94 = arith.mulf %91, %93 : vector<8x256xf32>
    %c64 = arith.constant 64 : index
    %c0_100 = arith.constant 0 : index
    %95 = vector.load %arg10[%c64, %c0_100] : memref<72x512xf32, #tpu.memory_space<vmem>>, vector<8x256xf32>
    tpu.vector_store %arg10[%c64, %c0_100], %94 {strides = array<i32>} : memref<72x512xf32, #tpu.memory_space<vmem>>, vector<8x256xf32>,
    %c1_101 = arith.constant 1 : index
    %c0_102 = arith.constant 0 : index
    %c145_103 = arith.constant 145 : index
    %96 = vector.load %arg9[%c1_101, %c0_102, %c145_103] : memref<2x8x512xf32, #tpu.memory_space<vmem>>, vector<1x8x256xf32>
    %97 = vector.shape_cast %96 : vector<1x8x256xf32> to vector<8x256xf32>
    %c2_104 = arith.constant 2 : index
    %c0_105 = arith.constant 0 : index
    %98 = vector.load %arg7[%c2_104, %c0_105] : memref<3x256xf32, #tpu.memory_space<vmem>>, vector<1x256xf32>
    %99 = vector.broadcast %98 : vector<1x256xf32> to vector<8x256xf32>
    %100 = arith.mulf %97, %99 : vector<8x256xf32>
    %c64_106 = arith.constant 64 : index
    %c256_107 = arith.constant 256 : index
    %101 = vector.load %arg10[%c64_106, %c256_107] : memref<72x512xf32, #tpu.memory_space<vmem>>, vector<8x256xf32>
    tpu.vector_store %arg10[%c64_106, %c256_107], %100 {strides = array<i32>} : memref<72x512xf32, #tpu.memory_space<vmem>>, vector<8x256xf32>,
    %c0_108 = arith.constant 0 : index
    %c0_109 = arith.constant 0 : index
    %102 = vector.load %arg1[%c0_108, %c0_109] : memref<8x72xf32, #tpu.memory_space<vmem>>, vector<8x72xf32>
    %c0_110 = arith.constant 0 : index
    %c0_111 = arith.constant 0 : index
    %103 = vector.load %arg10[%c0_110, %c0_111] : memref<72x512xf32, #tpu.memory_space<vmem>>, vector<72x512xf32>
    %cst_112 = arith.constant dense<0.000000e+00> : vector<8x512xf32>
    %104 = tpu.matmul %102, %103, %cst_112 {dimension_numbers = #tpu.dot_dimension_numbers<[1], [0], [0], [1], [0, 0, 1, 1], [], []>} : vector<8x72xf32>, vector<72x512xf32>, vector<8x512xf32> -> vector<8x512xf32>
    %cst_113 = arith.constant dense<0.000000e+00> : vector<8xf32>
    %105 = vector.multi_reduction <add>, %104, %cst_113 [1] : vector<8x512xf32> to vector<8xf32>
    %106 = vector.shape_cast %105 : vector<8xf32> to vector<8x1xf32>
    %107 = vector.extract_strided_slice %104 {offsets = [0, 0], sizes = [8, 256], strides = [1, 1]} : vector<8x512xf32> to vector<8x256xf32>
    %c0_114 = arith.constant 0 : index
    %c0_115 = arith.constant 0 : index
    %c128_116 = arith.constant 128 : index
    %108 = vector.load %arg9[%c0_114, %c0_115, %c128_116] : memref<2x8x512xf32, #tpu.memory_space<vmem>>, vector<1x8x256xf32>
    %109 = vector.shape_cast %108 : vector<1x8x256xf32> to vector<8x256xf32>
    %110 = vector.shape_cast %107 : vector<8x256xf32> to vector<1x8x256xf32>
    tpu.vector_store %arg9[%c0_114, %c0_115, %c128_116], %110 {strides = array<i32>} : memref<2x8x512xf32, #tpu.memory_space<vmem>>, vector<1x8x256xf32>,
    %111 = vector.extract_strided_slice %104 {offsets = [0, 256], sizes = [8, 256], strides = [1, 1]} : vector<8x512xf32> to vector<8x256xf32>
    %c1_117 = arith.constant 1 : index
    %c0_118 = arith.constant 0 : index
    %c128_119 = arith.constant 128 : index
    %112 = vector.load %arg9[%c1_117, %c0_118, %c128_119] : memref<2x8x512xf32, #tpu.memory_space<vmem>>, vector<1x8x256xf32>
    %113 = vector.shape_cast %112 : vector<1x8x256xf32> to vector<8x256xf32>
    %114 = vector.shape_cast %111 : vector<8x256xf32> to vector<1x8x256xf32>
    tpu.vector_store %arg9[%c1_117, %c0_118, %c128_119], %114 {strides = array<i32>} : memref<2x8x512xf32, #tpu.memory_space<vmem>>, vector<1x8x256xf32>,
    %cst_120 = arith.constant 0.001953125 : f32
    %115 = vector.broadcast %cst_120 : f32 to vector<8x1xf32>
    %116 = arith.mulf %106, %115 : vector<8x1xf32>
    %cst_121 = arith.constant 0.000000e+00 : f32
    %117 = vector.broadcast %cst_121 : f32 to vector<8x1xf32>
    %c0_122 = arith.constant 0 : index
    %c0_123 = arith.constant 0 : index
    %c128_124 = arith.constant 128 : index
    %118 = vector.load %arg9[%c0_122, %c0_123, %c128_124] : memref<2x8x512xf32, #tpu.memory_space<vmem>>, vector<1x8x256xf32>
    %119 = vector.shape_cast %118 : vector<1x8x256xf32> to vector<8x256xf32>
    %120 = vector.broadcast %116 : vector<8x1xf32> to vector<8x256xf32>
    %121 = arith.subf %119, %120 : vector<8x256xf32>
    %122 = arith.mulf %121, %121 : vector<8x256xf32>
    %cst_125 = arith.constant dense<0.000000e+00> : vector<8xf32>
    %123 = vector.multi_reduction <add>, %122, %cst_125 [1] : vector<8x256xf32> to vector<8xf32>
    %124 = vector.shape_cast %123 : vector<8xf32> to vector<8x1xf32>
    %125 = arith.addf %117, %124 : vector<8x1xf32>
    %c1_126 = arith.constant 1 : index
    %c0_127 = arith.constant 0 : index
    %c128_128 = arith.constant 128 : index
    %126 = vector.load %arg9[%c1_126, %c0_127, %c128_128] : memref<2x8x512xf32, #tpu.memory_space<vmem>>, vector<1x8x256xf32>
    %127 = vector.shape_cast %126 : vector<1x8x256xf32> to vector<8x256xf32>
    %128 = vector.broadcast %116 : vector<8x1xf32> to vector<8x256xf32>
    %129 = arith.subf %127, %128 : vector<8x256xf32>
    %130 = arith.mulf %129, %129 : vector<8x256xf32>
    %cst_129 = arith.constant dense<0.000000e+00> : vector<8xf32>
    %131 = vector.multi_reduction <add>, %130, %cst_129 [1] : vector<8x256xf32> to vector<8xf32>
    %132 = vector.shape_cast %131 : vector<8xf32> to vector<8x1xf32>
    %133 = arith.addf %125, %132 : vector<8x1xf32>
    %cst_130 = arith.constant 0.001953125 : f32
    %134 = vector.broadcast %cst_130 : f32 to vector<8x1xf32>
    %135 = arith.mulf %133, %134 : vector<8x1xf32>
    %c0_131 = arith.constant 0 : index
    %c0_132 = arith.constant 0 : index
    %136 = vector.load %arg2[%c0_131, %c0_132] : memref<8x1xf32, #tpu.memory_space<vmem>>, vector<8x1xf32>
    %cst_133 = arith.constant 9.99999974E-6 : f32
    %137 = vector.broadcast %cst_133 : f32 to vector<8x1xf32>
    %138 = arith.addf %135, %137 : vector<8x1xf32>
    %139 = math.rsqrt %138 : vector<8x1xf32>
    %140 = arith.mulf %136, %139 : vector<8x1xf32>
    %c0_134 = arith.constant 0 : index
    %c0_135 = arith.constant 0 : index
    %141 = vector.load %arg3[%c0_134, %c0_135] : memref<8x1xf32, #tpu.memory_space<vmem>>, vector<8x1xf32>
    %142 = arith.mulf %116, %140 : vector<8x1xf32>
    %143 = arith.subf %141, %142 : vector<8x1xf32>
    %c0_136 = arith.constant 0 : index
    %c0_137 = arith.constant 0 : index
    %c128_138 = arith.constant 128 : index
    %144 = vector.load %arg9[%c0_136, %c0_137, %c128_138] : memref<2x8x512xf32, #tpu.memory_space<vmem>>, vector<1x8x256xf32>
    %145 = vector.shape_cast %144 : vector<1x8x256xf32> to vector<8x256xf32>
    %146 = vector.broadcast %140 : vector<8x1xf32> to vector<8x256xf32>
    %147 = arith.mulf %145, %146 : vector<8x256xf32>
    %148 = vector.broadcast %143 : vector<8x1xf32> to vector<8x256xf32>
    %149 = arith.addf %147, %148 : vector<8x256xf32>
    %cst_139 = arith.constant 0.000000e+00 : f32
    %150 = vector.broadcast %cst_139 : f32 to vector<8x256xf32>
    %151 = arith.minimumf %149, %150 : vector<8x256xf32>
    %cst_140 = arith.constant 5.000000e-01 : f32
    %152 = vector.broadcast %cst_140 : f32 to vector<8x256xf32>
    %153 = arith.mulf %152, %151 : vector<8x256xf32>
    %154 = math.tanh %153 : vector<8x256xf32>
    %cst_141 = arith.constant 2.000000e+00 : f32
    %155 = vector.broadcast %cst_141 : f32 to vector<8x256xf32>
    %156 = arith.mulf %155, %154 : vector<8x256xf32>
    %cst_142 = arith.constant 1.000000e+00 : f32
    %157 = vector.broadcast %cst_142 : f32 to vector<8x256xf32>
    %158 = arith.subf %157, %154 : vector<8x256xf32>
    %159 = arith.divf %156, %158 : vector<8x256xf32>
    %cst_143 = arith.constant 0.000000e+00 : f32
    %160 = vector.broadcast %cst_143 : f32 to vector<8x256xf32>
    %161 = arith.cmpf ogt, %149, %160 : vector<8x256xf32>
    %162 = arith.select %161, %149, %159 : vector<8x256xi1>, vector<8x256xf32>
    %c0_144 = arith.constant 0 : index
    %c0_145 = arith.constant 0 : index
    %c128_146 = arith.constant 128 : index
    %163 = vector.load %arg9[%c0_144, %c0_145, %c128_146] : memref<2x8x512xf32, #tpu.memory_space<vmem>>, vector<1x8x256xf32>
    %164 = vector.shape_cast %163 : vector<1x8x256xf32> to vector<8x256xf32>
    %165 = vector.shape_cast %162 : vector<8x256xf32> to vector<1x8x256xf32>
    tpu.vector_store %arg9[%c0_144, %c0_145, %c128_146], %165 {strides = array<i32>} : memref<2x8x512xf32, #tpu.memory_space<vmem>>, vector<1x8x256xf32>,
    %c1_147 = arith.constant 1 : index
    %c0_148 = arith.constant 0 : index
    %c128_149 = arith.constant 128 : index
    %166 = vector.load %arg9[%c1_147, %c0_148, %c128_149] : memref<2x8x512xf32, #tpu.memory_space<vmem>>, vector<1x8x256xf32>
    %167 = vector.shape_cast %166 : vector<1x8x256xf32> to vector<8x256xf32>
    %168 = vector.broadcast %140 : vector<8x1xf32> to vector<8x256xf32>
    %169 = arith.mulf %167, %168 : vector<8x256xf32>
    %170 = vector.broadcast %143 : vector<8x1xf32> to vector<8x256xf32>
    %171 = arith.addf %169, %170 : vector<8x256xf32>
    %cst_150 = arith.constant 0.000000e+00 : f32
    %172 = vector.broadcast %cst_150 : f32 to vector<8x256xf32>
    %173 = arith.minimumf %171, %172 : vector<8x256xf32>
    %cst_151 = arith.constant 5.000000e-01 : f32
    %174 = vector.broadcast %cst_151 : f32 to vector<8x256xf32>
    %175 = arith.mulf %174, %173 : vector<8x256xf32>
    %176 = math.tanh %175 : vector<8x256xf32>
    %cst_152 = arith.constant 2.000000e+00 : f32
    %177 = vector.broadcast %cst_152 : f32 to vector<8x256xf32>
    %178 = arith.mulf %177, %176 : vector<8x256xf32>
    %cst_153 = arith.constant 1.000000e+00 : f32
    %179 = vector.broadcast %cst_153 : f32 to vector<8x256xf32>
    %180 = arith.subf %179, %176 : vector<8x256xf32>
    %181 = arith.divf %178, %180 : vector<8x256xf32>
    %cst_154 = arith.constant 0.000000e+00 : f32
    %182 = vector.broadcast %cst_154 : f32 to vector<8x256xf32>
    %183 = arith.cmpf ogt, %171, %182 : vector<8x256xf32>
    %184 = arith.select %183, %171, %181 : vector<8x256xi1>, vector<8x256xf32>
    %c1_155 = arith.constant 1 : index
    %c0_156 = arith.constant 0 : index
    %c128_157 = arith.constant 128 : index
    %185 = vector.load %arg9[%c1_155, %c0_156, %c128_157] : memref<2x8x512xf32, #tpu.memory_space<vmem>>, vector<1x8x256xf32>
    %186 = vector.shape_cast %185 : vector<1x8x256xf32> to vector<8x256xf32>
    %187 = vector.shape_cast %184 : vector<8x256xf32> to vector<1x8x256xf32>
    tpu.vector_store %arg9[%c1_155, %c0_156, %c128_157], %187 {strides = array<i32>} : memref<2x8x512xf32, #tpu.memory_space<vmem>>, vector<1x8x256xf32>,
    %c0_158 = arith.constant 0 : index
    %c0_159 = arith.constant 0 : index
    %c111_160 = arith.constant 111 : index
    %188 = vector.load %arg9[%c0_158, %c0_159, %c111_160] : memref<2x8x512xf32, #tpu.memory_space<vmem>>, vector<1x8x256xf32>
    %189 = vector.shape_cast %188 : vector<1x8x256xf32> to vector<8x256xf32>
    %c0_161 = arith.constant 0 : index
    %c0_162 = arith.constant 0 : index
    %190 = vector.load %arg7[%c0_161, %c0_162] : memref<3x256xf32, #tpu.memory_space<vmem>>, vector<1x256xf32>
    %191 = vector.broadcast %190 : vector<1x256xf32> to vector<8x256xf32>
    %192 = arith.mulf %189, %191 : vector<8x256xf32>
    %c0_163 = arith.constant 0 : index
    %c0_164 = arith.constant 0 : index
    %193 = vector.load %arg10[%c0_163, %c0_164] : memref<72x512xf32, #tpu.memory_space<vmem>>, vector<8x256xf32>
    tpu.vector_store %arg10[%c0_163, %c0_164], %192 {strides = array<i32>} : memref<72x512xf32, #tpu.memory_space<vmem>>, vector<8x256xf32>,
    %c1_165 = arith.constant 1 : index
    %c0_166 = arith.constant 0 : index
    %c111_167 = arith.constant 111 : index
    %194 = vector.load %arg9[%c1_165, %c0_166, %c111_167] : memref<2x8x512xf32, #tpu.memory_space<vmem>>, vector<1x8x256xf32>
    %195 = vector.shape_cast %194 : vector<1x8x256xf32> to vector<8x256xf32>
    %c0_168 = arith.constant 0 : index
    %c0_169 = arith.constant 0 : index
    %196 = vector.load %arg7[%c0_168, %c0_169] : memref<3x256xf32, #tpu.memory_space<vmem>>, vector<1x256xf32>
    %197 = vector.broadcast %196 : vector<1x256xf32> to vector<8x256xf32>
    %198 = arith.mulf %195, %197 : vector<8x256xf32>
    %c0_170 = arith.constant 0 : index
    %c256_171 = arith.constant 256 : index
    %199 = vector.load %arg10[%c0_170, %c256_171] : memref<72x512xf32, #tpu.memory_space<vmem>>, vector<8x256xf32>
    tpu.vector_store %arg10[%c0_170, %c256_171], %198 {strides = array<i32>} : memref<72x512xf32, #tpu.memory_space<vmem>>, vector<8x256xf32>,
    %c0_172 = arith.constant 0 : index
    %c0_173 = arith.constant 0 : index
    %c112_174 = arith.constant 112 : index
    %200 = vector.load %arg9[%c0_172, %c0_173, %c112_174] : memref<2x8x512xf32, #tpu.memory_space<vmem>>, vector<1x8x256xf32>
    %201 = vector.shape_cast %200 : vector<1x8x256xf32> to vector<8x256xf32>
    %c8_175 = arith.constant 8 : index
    %c0_176 = arith.constant 0 : index
    %202 = vector.load %arg10[%c8_175, %c0_176] : memref<72x512xf32, #tpu.memory_space<vmem>>, vector<8x256xf32>
    tpu.vector_store %arg10[%c8_175, %c0_176], %201 {strides = array<i32>} : memref<72x512xf32, #tpu.memory_space<vmem>>, vector<8x256xf32>,
    %c1_177 = arith.constant 1 : index
    %c0_178 = arith.constant 0 : index
    %c112_179 = arith.constant 112 : index
    %203 = vector.load %arg9[%c1_177, %c0_178, %c112_179] : memref<2x8x512xf32, #tpu.memory_space<vmem>>, vector<1x8x256xf32>
    %204 = vector.shape_cast %203 : vector<1x8x256xf32> to vector<8x256xf32>
    %c8_180 = arith.constant 8 : index
    %c256_181 = arith.constant 256 : index
    %205 = vector.load %arg10[%c8_180, %c256_181] : memref<72x512xf32, #tpu.memory_space<vmem>>, vector<8x256xf32>
    tpu.vector_store %arg10[%c8_180, %c256_181], %204 {strides = array<i32>} : memref<72x512xf32, #tpu.memory_space<vmem>>, vector<8x256xf32>,
    %c0_182 = arith.constant 0 : index
    %c0_183 = arith.constant 0 : index
    %c113_184 = arith.constant 113 : index
    %206 = vector.load %arg9[%c0_182, %c0_183, %c113_184] : memref<2x8x512xf32, #tpu.memory_space<vmem>>, vector<1x8x256xf32>
    %207 = vector.shape_cast %206 : vector<1x8x256xf32> to vector<8x256xf32>
    %c2_185 = arith.constant 2 : index
    %c0_186 = arith.constant 0 : index
    %208 = vector.load %arg7[%c2_185, %c0_186] : memref<3x256xf32, #tpu.memory_space<vmem>>, vector<1x256xf32>
    %209 = vector.broadcast %208 : vector<1x256xf32> to vector<8x256xf32>
    %210 = arith.mulf %207, %209 : vector<8x256xf32>
    %c16_187 = arith.constant 16 : index
    %c0_188 = arith.constant 0 : index
    %211 = vector.load %arg10[%c16_187, %c0_188] : memref<72x512xf32, #tpu.memory_space<vmem>>, vector<8x256xf32>
    tpu.vector_store %arg10[%c16_187, %c0_188], %210 {strides = array<i32>} : memref<72x512xf32, #tpu.memory_space<vmem>>, vector<8x256xf32>,
    %c1_189 = arith.constant 1 : index
    %c0_190 = arith.constant 0 : index
    %c113_191 = arith.constant 113 : index
    %212 = vector.load %arg9[%c1_189, %c0_190, %c113_191] : memref<2x8x512xf32, #tpu.memory_space<vmem>>, vector<1x8x256xf32>
    %213 = vector.shape_cast %212 : vector<1x8x256xf32> to vector<8x256xf32>
    %c2_192 = arith.constant 2 : index
    %c0_193 = arith.constant 0 : index
    %214 = vector.load %arg7[%c2_192, %c0_193] : memref<3x256xf32, #tpu.memory_space<vmem>>, vector<1x256xf32>
    %215 = vector.broadcast %214 : vector<1x256xf32> to vector<8x256xf32>
    %216 = arith.mulf %213, %215 : vector<8x256xf32>
    %c16_194 = arith.constant 16 : index
    %c256_195 = arith.constant 256 : index
    %217 = vector.load %arg10[%c16_194, %c256_195] : memref<72x512xf32, #tpu.memory_space<vmem>>, vector<8x256xf32>
    tpu.vector_store %arg10[%c16_194, %c256_195], %216 {strides = array<i32>} : memref<72x512xf32, #tpu.memory_space<vmem>>, vector<8x256xf32>,
    %c0_196 = arith.constant 0 : index
    %c0_197 = arith.constant 0 : index
    %c127_198 = arith.constant 127 : index
    %218 = vector.load %arg9[%c0_196, %c0_197, %c127_198] : memref<2x8x512xf32, #tpu.memory_space<vmem>>, vector<1x8x256xf32>
    %219 = vector.shape_cast %218 : vector<1x8x256xf32> to vector<8x256xf32>
    %c0_199 = arith.constant 0 : index
    %c0_200 = arith.constant 0 : index
    %220 = vector.load %arg7[%c0_199, %c0_200] : memref<3x256xf32, #tpu.memory_space<vmem>>, vector<1x256xf32>
    %221 = vector.broadcast %220 : vector<1x256xf32> to vector<8x256xf32>
    %222 = arith.mulf %219, %221 : vector<8x256xf32>
    %c24_201 = arith.constant 24 : index
    %c0_202 = arith.constant 0 : index
    %223 = vector.load %arg10[%c24_201, %c0_202] : memref<72x512xf32, #tpu.memory_space<vmem>>, vector<8x256xf32>
    tpu.vector_store %arg10[%c24_201, %c0_202], %222 {strides = array<i32>} : memref<72x512xf32, #tpu.memory_space<vmem>>, vector<8x256xf32>,
    %c1_203 = arith.constant 1 : index
    %c0_204 = arith.constant 0 : index
    %c127_205 = arith.constant 127 : index
    %224 = vector.load %arg9[%c1_203, %c0_204, %c127_205] : memref<2x8x512xf32, #tpu.memory_space<vmem>>, vector<1x8x256xf32>
    %225 = vector.shape_cast %224 : vector<1x8x256xf32> to vector<8x256xf32>
    %c0_206 = arith.constant 0 : index
    %c0_207 = arith.constant 0 : index
    %226 = vector.load %arg7[%c0_206, %c0_207] : memref<3x256xf32, #tpu.memory_space<vmem>>, vector<1x256xf32>
    %227 = vector.broadcast %226 : vector<1x256xf32> to vector<8x256xf32>
    %228 = arith.mulf %225, %227 : vector<8x256xf32>
    %c24_208 = arith.constant 24 : index
    %c256_209 = arith.constant 256 : index
    %229 = vector.load %arg10[%c24_208, %c256_209] : memref<72x512xf32, #tpu.memory_space<vmem>>, vector<8x256xf32>
    tpu.vector_store %arg10[%c24_208, %c256_209], %228 {strides = array<i32>} : memref<72x512xf32, #tpu.memory_space<vmem>>, vector<8x256xf32>,
    %c0_210 = arith.constant 0 : index
    %c0_211 = arith.constant 0 : index
    %c128_212 = arith.constant 128 : index
    %230 = vector.load %arg9[%c0_210, %c0_211, %c128_212] : memref<2x8x512xf32, #tpu.memory_space<vmem>>, vector<1x8x256xf32>
    %231 = vector.shape_cast %230 : vector<1x8x256xf32> to vector<8x256xf32>
    %c32_213 = arith.constant 32 : index
    %c0_214 = arith.constant 0 : index
    %232 = vector.load %arg10[%c32_213, %c0_214] : memref<72x512xf32, #tpu.memory_space<vmem>>, vector<8x256xf32>
    tpu.vector_store %arg10[%c32_213, %c0_214], %231 {strides = array<i32>} : memref<72x512xf32, #tpu.memory_space<vmem>>, vector<8x256xf32>,
    %c1_215 = arith.constant 1 : index
    %c0_216 = arith.constant 0 : index
    %c128_217 = arith.constant 128 : index
    %233 = vector.load %arg9[%c1_215, %c0_216, %c128_217] : memref<2x8x512xf32, #tpu.memory_space<vmem>>, vector<1x8x256xf32>
    %234 = vector.shape_cast %233 : vector<1x8x256xf32> to vector<8x256xf32>
    %c32_218 = arith.constant 32 : index
    %c256_219 = arith.constant 256 : index
    %235 = vector.load %arg10[%c32_218, %c256_219] : memref<72x512xf32, #tpu.memory_space<vmem>>, vector<8x256xf32>
    tpu.vector_store %arg10[%c32_218, %c256_219], %234 {strides = array<i32>} : memref<72x512xf32, #tpu.memory_space<vmem>>, vector<8x256xf32>,
    %c0_220 = arith.constant 0 : index
    %c0_221 = arith.constant 0 : index
    %c129_222 = arith.constant 129 : index
    %236 = vector.load %arg9[%c0_220, %c0_221, %c129_222] : memref<2x8x512xf32, #tpu.memory_space<vmem>>, vector<1x8x256xf32>
    %237 = vector.shape_cast %236 : vector<1x8x256xf32> to vector<8x256xf32>
    %c2_223 = arith.constant 2 : index
    %c0_224 = arith.constant 0 : index
    %238 = vector.load %arg7[%c2_223, %c0_224] : memref<3x256xf32, #tpu.memory_space<vmem>>, vector<1x256xf32>
    %239 = vector.broadcast %238 : vector<1x256xf32> to vector<8x256xf32>
    %240 = arith.mulf %237, %239 : vector<8x256xf32>
    %c40_225 = arith.constant 40 : index
    %c0_226 = arith.constant 0 : index
    %241 = vector.load %arg10[%c40_225, %c0_226] : memref<72x512xf32, #tpu.memory_space<vmem>>, vector<8x256xf32>
    tpu.vector_store %arg10[%c40_225, %c0_226], %240 {strides = array<i32>} : memref<72x512xf32, #tpu.memory_space<vmem>>, vector<8x256xf32>,
    %c1_227 = arith.constant 1 : index
    %c0_228 = arith.constant 0 : index
    %c129_229 = arith.constant 129 : index
    %242 = vector.load %arg9[%c1_227, %c0_228, %c129_229] : memref<2x8x512xf32, #tpu.memory_space<vmem>>, vector<1x8x256xf32>
    %243 = vector.shape_cast %242 : vector<1x8x256xf32> to vector<8x256xf32>
    %c2_230 = arith.constant 2 : index
    %c0_231 = arith.constant 0 : index
    %244 = vector.load %arg7[%c2_230, %c0_231] : memref<3x256xf32, #tpu.memory_space<vmem>>, vector<1x256xf32>
    %245 = vector.broadcast %244 : vector<1x256xf32> to vector<8x256xf32>
    %246 = arith.mulf %243, %245 : vector<8x256xf32>
    %c40_232 = arith.constant 40 : index
    %c256_233 = arith.constant 256 : index
    %247 = vector.load %arg10[%c40_232, %c256_233] : memref<72x512xf32, #tpu.memory_space<vmem>>, vector<8x256xf32>
    tpu.vector_store %arg10[%c40_232, %c256_233], %246 {strides = array<i32>} : memref<72x512xf32, #tpu.memory_space<vmem>>, vector<8x256xf32>,
    %c0_234 = arith.constant 0 : index
    %c0_235 = arith.constant 0 : index
    %c143_236 = arith.constant 143 : index
    %248 = vector.load %arg9[%c0_234, %c0_235, %c143_236] : memref<2x8x512xf32, #tpu.memory_space<vmem>>, vector<1x8x256xf32>
    %249 = vector.shape_cast %248 : vector<1x8x256xf32> to vector<8x256xf32>
    %c0_237 = arith.constant 0 : index
    %c0_238 = arith.constant 0 : index
    %250 = vector.load %arg7[%c0_237, %c0_238] : memref<3x256xf32, #tpu.memory_space<vmem>>, vector<1x256xf32>
    %251 = vector.broadcast %250 : vector<1x256xf32> to vector<8x256xf32>
    %252 = arith.mulf %249, %251 : vector<8x256xf32>
    %c48_239 = arith.constant 48 : index
    %c0_240 = arith.constant 0 : index
    %253 = vector.load %arg10[%c48_239, %c0_240] : memref<72x512xf32, #tpu.memory_space<vmem>>, vector<8x256xf32>
    tpu.vector_store %arg10[%c48_239, %c0_240], %252 {strides = array<i32>} : memref<72x512xf32, #tpu.memory_space<vmem>>, vector<8x256xf32>,
    %c1_241 = arith.constant 1 : index
    %c0_242 = arith.constant 0 : index
    %c143_243 = arith.constant 143 : index
    %254 = vector.load %arg9[%c1_241, %c0_242, %c143_243] : memref<2x8x512xf32, #tpu.memory_space<vmem>>, vector<1x8x256xf32>
    %255 = vector.shape_cast %254 : vector<1x8x256xf32> to vector<8x256xf32>
    %c0_244 = arith.constant 0 : index
    %c0_245 = arith.constant 0 : index
    %256 = vector.load %arg7[%c0_244, %c0_245] : memref<3x256xf32, #tpu.memory_space<vmem>>, vector<1x256xf32>
    %257 = vector.broadcast %256 : vector<1x256xf32> to vector<8x256xf32>
    %258 = arith.mulf %255, %257 : vector<8x256xf32>
    %c48_246 = arith.constant 48 : index
    %c256_247 = arith.constant 256 : index
    %259 = vector.load %arg10[%c48_246, %c256_247] : memref<72x512xf32, #tpu.memory_space<vmem>>, vector<8x256xf32>
    tpu.vector_store %arg10[%c48_246, %c256_247], %258 {strides = array<i32>} : memref<72x512xf32, #tpu.memory_space<vmem>>, vector<8x256xf32>,
    %c0_248 = arith.constant 0 : index
    %c0_249 = arith.constant 0 : index
    %c144_250 = arith.constant 144 : index
    %260 = vector.load %arg9[%c0_248, %c0_249, %c144_250] : memref<2x8x512xf32, #tpu.memory_space<vmem>>, vector<1x8x256xf32>
    %261 = vector.shape_cast %260 : vector<1x8x256xf32> to vector<8x256xf32>
    %c56_251 = arith.constant 56 : index
    %c0_252 = arith.constant 0 : index
    %262 = vector.load %arg10[%c56_251, %c0_252] : memref<72x512xf32, #tpu.memory_space<vmem>>, vector<8x256xf32>
    tpu.vector_store %arg10[%c56_251, %c0_252], %261 {strides = array<i32>} : memref<72x512xf32, #tpu.memory_space<vmem>>, vector<8x256xf32>,
    %c1_253 = arith.constant 1 : index
    %c0_254 = arith.constant 0 : index
    %c144_255 = arith.constant 144 : index
    %263 = vector.load %arg9[%c1_253, %c0_254, %c144_255] : memref<2x8x512xf32, #tpu.memory_space<vmem>>, vector<1x8x256xf32>
    %264 = vector.shape_cast %263 : vector<1x8x256xf32> to vector<8x256xf32>
    %c56_256 = arith.constant 56 : index
    %c256_257 = arith.constant 256 : index
    %265 = vector.load %arg10[%c56_256, %c256_257] : memref<72x512xf32, #tpu.memory_space<vmem>>, vector<8x256xf32>
    tpu.vector_store %arg10[%c56_256, %c256_257], %264 {strides = array<i32>} : memref<72x512xf32, #tpu.memory_space<vmem>>, vector<8x256xf32>,
    %c0_258 = arith.constant 0 : index
    %c0_259 = arith.constant 0 : index
    %c145_260 = arith.constant 145 : index
    %266 = vector.load %arg9[%c0_258, %c0_259, %c145_260] : memref<2x8x512xf32, #tpu.memory_space<vmem>>, vector<1x8x256xf32>
    %267 = vector.shape_cast %266 : vector<1x8x256xf32> to vector<8x256xf32>
    %c2_261 = arith.constant 2 : index
    %c0_262 = arith.constant 0 : index
    %268 = vector.load %arg7[%c2_261, %c0_262] : memref<3x256xf32, #tpu.memory_space<vmem>>, vector<1x256xf32>
    %269 = vector.broadcast %268 : vector<1x256xf32> to vector<8x256xf32>
    %270 = arith.mulf %267, %269 : vector<8x256xf32>
    %c64_263 = arith.constant 64 : index
    %c0_264 = arith.constant 0 : index
    %271 = vector.load %arg10[%c64_263, %c0_264] : memref<72x512xf32, #tpu.memory_space<vmem>>, vector<8x256xf32>
    tpu.vector_store %arg10[%c64_263, %c0_264], %270 {strides = array<i32>} : memref<72x512xf32, #tpu.memory_space<vmem>>, vector<8x256xf32>,
    %c1_265 = arith.constant 1 : index
    %c0_266 = arith.constant 0 : index
    %c145_267 = arith.constant 145 : index
    %272 = vector.load %arg9[%c1_265, %c0_266, %c145_267] : memref<2x8x512xf32, #tpu.memory_space<vmem>>, vector<1x8x256xf32>
    %273 = vector.shape_cast %272 : vector<1x8x256xf32> to vector<8x256xf32>
    %c2_268 = arith.constant 2 : index
    %c0_269 = arith.constant 0 : index
    %274 = vector.load %arg7[%c2_268, %c0_269] : memref<3x256xf32, #tpu.memory_space<vmem>>, vector<1x256xf32>
    %275 = vector.broadcast %274 : vector<1x256xf32> to vector<8x256xf32>
    %276 = arith.mulf %273, %275 : vector<8x256xf32>
    %c64_270 = arith.constant 64 : index
    %c256_271 = arith.constant 256 : index
    %277 = vector.load %arg10[%c64_270, %c256_271] : memref<72x512xf32, #tpu.memory_space<vmem>>, vector<8x256xf32>
    tpu.vector_store %arg10[%c64_270, %c256_271], %276 {strides = array<i32>} : memref<72x512xf32, #tpu.memory_space<vmem>>, vector<8x256xf32>,
    %c0_272 = arith.constant 0 : index
    %c0_273 = arith.constant 0 : index
    %278 = vector.load %arg4[%c0_272, %c0_273] : memref<8x72xf32, #tpu.memory_space<vmem>>, vector<8x72xf32>
    %c0_274 = arith.constant 0 : index
    %c0_275 = arith.constant 0 : index
    %279 = vector.load %arg10[%c0_274, %c0_275] : memref<72x512xf32, #tpu.memory_space<vmem>>, vector<72x512xf32>
    %cst_276 = arith.constant dense<0.000000e+00> : vector<8x512xf32>
    %280 = tpu.matmul %278, %279, %cst_276 {dimension_numbers = #tpu.dot_dimension_numbers<[1], [0], [0], [1], [0, 0, 1, 1], [], []>} : vector<8x72xf32>, vector<72x512xf32>, vector<8x512xf32> -> vector<8x512xf32>
    %cst_277 = arith.constant dense<0.000000e+00> : vector<8xf32>
    %281 = vector.multi_reduction <add>, %280, %cst_277 [1] : vector<8x512xf32> to vector<8xf32>
    %282 = vector.shape_cast %281 : vector<8xf32> to vector<8x1xf32>
    %283 = vector.extract_strided_slice %280 {offsets = [0, 0], sizes = [8, 256], strides = [1, 1]} : vector<8x512xf32> to vector<8x256xf32>
    %c0_278 = arith.constant 0 : index
    %c0_279 = arith.constant 0 : index
    %c0_280 = arith.constant 0 : index
    %284 = vector.load %arg8[%c0_278, %c0_279, %c0_280] : memref<2x8x256xf32, #tpu.memory_space<vmem>>, vector<1x8x256xf32>
    %285 = vector.shape_cast %284 : vector<1x8x256xf32> to vector<8x256xf32>
    %286 = vector.shape_cast %283 : vector<8x256xf32> to vector<1x8x256xf32>
    tpu.vector_store %arg8[%c0_278, %c0_279, %c0_280], %286 {strides = array<i32>} : memref<2x8x256xf32, #tpu.memory_space<vmem>>, vector<1x8x256xf32>,
    %287 = vector.extract_strided_slice %280 {offsets = [0, 256], sizes = [8, 256], strides = [1, 1]} : vector<8x512xf32> to vector<8x256xf32>
    %c1_281 = arith.constant 1 : index
    %c0_282 = arith.constant 0 : index
    %c0_283 = arith.constant 0 : index
    %288 = vector.load %arg8[%c1_281, %c0_282, %c0_283] : memref<2x8x256xf32, #tpu.memory_space<vmem>>, vector<1x8x256xf32>
    %289 = vector.shape_cast %288 : vector<1x8x256xf32> to vector<8x256xf32>
    %290 = vector.shape_cast %287 : vector<8x256xf32> to vector<1x8x256xf32>
    tpu.vector_store %arg8[%c1_281, %c0_282, %c0_283], %290 {strides = array<i32>} : memref<2x8x256xf32, #tpu.memory_space<vmem>>, vector<1x8x256xf32>,
    %cst_284 = arith.constant 0.001953125 : f32
    %291 = vector.broadcast %cst_284 : f32 to vector<8x1xf32>
    %292 = arith.mulf %282, %291 : vector<8x1xf32>
    %cst_285 = arith.constant 0.000000e+00 : f32
    %293 = vector.broadcast %cst_285 : f32 to vector<8x1xf32>
    %c0_286 = arith.constant 0 : index
    %c0_287 = arith.constant 0 : index
    %c0_288 = arith.constant 0 : index
    %294 = vector.load %arg8[%c0_286, %c0_287, %c0_288] : memref<2x8x256xf32, #tpu.memory_space<vmem>>, vector<1x8x256xf32>
    %295 = vector.shape_cast %294 : vector<1x8x256xf32> to vector<8x256xf32>
    %296 = vector.broadcast %292 : vector<8x1xf32> to vector<8x256xf32>
    %297 = arith.subf %295, %296 : vector<8x256xf32>
    %298 = arith.mulf %297, %297 : vector<8x256xf32>
    %cst_289 = arith.constant dense<0.000000e+00> : vector<8xf32>
    %299 = vector.multi_reduction <add>, %298, %cst_289 [1] : vector<8x256xf32> to vector<8xf32>
    %300 = vector.shape_cast %299 : vector<8xf32> to vector<8x1xf32>
    %301 = arith.addf %293, %300 : vector<8x1xf32>
    %c1_290 = arith.constant 1 : index
    %c0_291 = arith.constant 0 : index
    %c0_292 = arith.constant 0 : index
    %302 = vector.load %arg8[%c1_290, %c0_291, %c0_292] : memref<2x8x256xf32, #tpu.memory_space<vmem>>, vector<1x8x256xf32>
    %303 = vector.shape_cast %302 : vector<1x8x256xf32> to vector<8x256xf32>
    %304 = vector.broadcast %292 : vector<8x1xf32> to vector<8x256xf32>
    %305 = arith.subf %303, %304 : vector<8x256xf32>
    %306 = arith.mulf %305, %305 : vector<8x256xf32>
    %cst_293 = arith.constant dense<0.000000e+00> : vector<8xf32>
    %307 = vector.multi_reduction <add>, %306, %cst_293 [1] : vector<8x256xf32> to vector<8xf32>
    %308 = vector.shape_cast %307 : vector<8xf32> to vector<8x1xf32>
    %309 = arith.addf %301, %308 : vector<8x1xf32>
    %cst_294 = arith.constant 0.001953125 : f32
    %310 = vector.broadcast %cst_294 : f32 to vector<8x1xf32>
    %311 = arith.mulf %309, %310 : vector<8x1xf32>
    %c0_295 = arith.constant 0 : index
    %c0_296 = arith.constant 0 : index
    %312 = vector.load %arg5[%c0_295, %c0_296] : memref<8x1xf32, #tpu.memory_space<vmem>>, vector<8x1xf32>
    %cst_297 = arith.constant 9.99999974E-6 : f32
    %313 = vector.broadcast %cst_297 : f32 to vector<8x1xf32>
    %314 = arith.addf %311, %313 : vector<8x1xf32>
    %315 = math.rsqrt %314 : vector<8x1xf32>
    %316 = arith.mulf %312, %315 : vector<8x1xf32>
    %c0_298 = arith.constant 0 : index
    %c0_299 = arith.constant 0 : index
    %317 = vector.load %arg6[%c0_298, %c0_299] : memref<8x1xf32, #tpu.memory_space<vmem>>, vector<8x1xf32>
    %318 = arith.mulf %292, %316 : vector<8x1xf32>
    %319 = arith.subf %317, %318 : vector<8x1xf32>
    %c0_300 = arith.constant 0 : index
    %c0_301 = arith.constant 0 : index
    %c0_302 = arith.constant 0 : index
    %320 = vector.load %arg8[%c0_300, %c0_301, %c0_302] : memref<2x8x256xf32, #tpu.memory_space<vmem>>, vector<1x8x256xf32>
    %321 = vector.shape_cast %320 : vector<1x8x256xf32> to vector<8x256xf32>
    %322 = vector.broadcast %316 : vector<8x1xf32> to vector<8x256xf32>
    %323 = arith.mulf %321, %322 : vector<8x256xf32>
    %324 = vector.broadcast %319 : vector<8x1xf32> to vector<8x256xf32>
    %325 = arith.addf %323, %324 : vector<8x256xf32>
    %cst_303 = arith.constant 0.000000e+00 : f32
    %326 = vector.broadcast %cst_303 : f32 to vector<8x256xf32>
    %327 = arith.minimumf %325, %326 : vector<8x256xf32>
    %cst_304 = arith.constant 5.000000e-01 : f32
    %328 = vector.broadcast %cst_304 : f32 to vector<8x256xf32>
    %329 = arith.mulf %328, %327 : vector<8x256xf32>
    %330 = math.tanh %329 : vector<8x256xf32>
    %cst_305 = arith.constant 2.000000e+00 : f32
    %331 = vector.broadcast %cst_305 : f32 to vector<8x256xf32>
    %332 = arith.mulf %331, %330 : vector<8x256xf32>
    %cst_306 = arith.constant 1.000000e+00 : f32
    %333 = vector.broadcast %cst_306 : f32 to vector<8x256xf32>
    %334 = arith.subf %333, %330 : vector<8x256xf32>
    %335 = arith.divf %332, %334 : vector<8x256xf32>
    %cst_307 = arith.constant 0.000000e+00 : f32
    %336 = vector.broadcast %cst_307 : f32 to vector<8x256xf32>
    %337 = arith.cmpf ogt, %325, %336 : vector<8x256xf32>
    %338 = arith.select %337, %325, %335 : vector<8x256xi1>, vector<8x256xf32>
    %c0_308 = arith.constant 0 : index
    %c0_309 = arith.constant 0 : index
    %c0_310 = arith.constant 0 : index
    %339 = vector.load %arg8[%c0_308, %c0_309, %c0_310] : memref<2x8x256xf32, #tpu.memory_space<vmem>>, vector<1x8x256xf32>
    %340 = vector.shape_cast %339 : vector<1x8x256xf32> to vector<8x256xf32>
    %341 = vector.shape_cast %338 : vector<8x256xf32> to vector<1x8x256xf32>
    tpu.vector_store %arg8[%c0_308, %c0_309, %c0_310], %341 {strides = array<i32>} : memref<2x8x256xf32, #tpu.memory_space<vmem>>, vector<1x8x256xf32>,
    %c1_311 = arith.constant 1 : index
    %c0_312 = arith.constant 0 : index
    %c0_313 = arith.constant 0 : index
    %342 = vector.load %arg8[%c1_311, %c0_312, %c0_313] : memref<2x8x256xf32, #tpu.memory_space<vmem>>, vector<1x8x256xf32>
    %343 = vector.shape_cast %342 : vector<1x8x256xf32> to vector<8x256xf32>
    %344 = vector.broadcast %316 : vector<8x1xf32> to vector<8x256xf32>
    %345 = arith.mulf %343, %344 : vector<8x256xf32>
    %346 = vector.broadcast %319 : vector<8x1xf32> to vector<8x256xf32>
    %347 = arith.addf %345, %346 : vector<8x256xf32>
    %cst_314 = arith.constant 0.000000e+00 : f32
    %348 = vector.broadcast %cst_314 : f32 to vector<8x256xf32>
    %349 = arith.minimumf %347, %348 : vector<8x256xf32>
    %cst_315 = arith.constant 5.000000e-01 : f32
    %350 = vector.broadcast %cst_315 : f32 to vector<8x256xf32>
    %351 = arith.mulf %350, %349 : vector<8x256xf32>
    %352 = math.tanh %351 : vector<8x256xf32>
    %cst_316 = arith.constant 2.000000e+00 : f32
    %353 = vector.broadcast %cst_316 : f32 to vector<8x256xf32>
    %354 = arith.mulf %353, %352 : vector<8x256xf32>
    %cst_317 = arith.constant 1.000000e+00 : f32
    %355 = vector.broadcast %cst_317 : f32 to vector<8x256xf32>
    %356 = arith.subf %355, %352 : vector<8x256xf32>
    %357 = arith.divf %354, %356 : vector<8x256xf32>
    %cst_318 = arith.constant 0.000000e+00 : f32
    %358 = vector.broadcast %cst_318 : f32 to vector<8x256xf32>
    %359 = arith.cmpf ogt, %347, %358 : vector<8x256xf32>
    %360 = arith.select %359, %347, %357 : vector<8x256xi1>, vector<8x256xf32>
    %c1_319 = arith.constant 1 : index
    %c0_320 = arith.constant 0 : index
    %c0_321 = arith.constant 0 : index
    %361 = vector.load %arg8[%c1_319, %c0_320, %c0_321] : memref<2x8x256xf32, #tpu.memory_space<vmem>>, vector<1x8x256xf32>
    %362 = vector.shape_cast %361 : vector<1x8x256xf32> to vector<8x256xf32>
    %363 = vector.shape_cast %360 : vector<8x256xf32> to vector<1x8x256xf32>
    tpu.vector_store %arg8[%c1_319, %c0_320, %c0_321], %363 {strides = array<i32>} : memref<2x8x256xf32, #tpu.memory_space<vmem>>, vector<1x8x256xf32>,
    return
  }
}

</mosaic_0001>

<llo_original>
// kernel: basic_block_forward.1
$region0: #{basic_block_forward.1}
  #allocation0 [shape = 'u32[]', space=smem, size = 0x4, offset = 0x4, fixed_abs, tag = 'smem constant byte address 0x4 - core index']
  #allocation1 [shape = 'u32[72,128]{1,0:T(1,128)}', space=vmem, size = 0x9000, scoped, tag = 'internal scratch']
  #allocation2 [shape = 'f32[2,8,512]{2,1,0:T(8,128)}', space=vmem, size = 0x8000, scoped, tag = 'scratch operand']
  #allocation3 [shape = 'f32[72,512]{1,0:T(8,128)}', space=vmem, size = 0x24000, scoped, tag = 'scratch operand']
  %s0 = inlined_call_operand.vmem [shape: f32[2,8,256], index: 0, kind: input, shape index: {}]
  %s1 = inlined_call_operand.vmem [shape: f32[8,72], index: 1, kind: input, shape index: {}]
  %s2 = inlined_call_operand.vmem [shape: f32[8,1], index: 2, kind: input, shape index: {}]
  %s3 = inlined_call_operand.vmem [shape: f32[8,1], index: 3, kind: input, shape index: {}]
  %s4 = inlined_call_operand.vmem [shape: f32[8,72], index: 4, kind: input, shape index: {}]
  %s5 = inlined_call_operand.vmem [shape: f32[8,1], index: 5, kind: input, shape index: {}]
  %s6 = inlined_call_operand.vmem [shape: f32[8,1], index: 6, kind: input, shape index: {}]
  %s7 = inlined_call_operand.vmem [shape: f32[3,256], index: 7, kind: input, shape index: {}]
  %s8 = inlined_call_operand.vmem [shape: f32[2,8,256], index: 8, kind: output, shape index: {}]
  %s9 = sld [smem:[#allocation0]]
  $region42: #{basic_block_forward.1} parent=0
    _
  %s11 = ssub.s32 1, %s9
  %s12 = scalar_select 0, %s11, %s9
  // Predicated region
  $region2: #{basic_block_forward.1} parent=0 // pred_check
    _
  $region3: #{basic_block_forward.1} parent=0 // pred_check_branch
    %14 = sbr.rel (0) target = $region5
  $region4: #{basic_block_forward.1} parent=0 // pred_region
    _
  $region5: #{basic_block_forward.1} parent=0 // pred_fallthru
    _
  // Predicated region
  $region6: #{basic_block_forward.1} parent=0 // pred_check
    _
  $region7: #{basic_block_forward.1} parent=0 // pred_check_branch
    %16 = sbr.rel (0) target = $region9
  $region8: #{basic_block_forward.1} parent=0 // pred_region
    _
  $region9: #{basic_block_forward.1} parent=0 // pred_fallthru
    _
  // Predicated region
  $region10: #{basic_block_forward.1} parent=0 // pred_check
    _
  $region11: #{basic_block_forward.1} parent=0 // pred_check_branch
    %18 = sbr.rel (0) target = $region13
  $region12: #{basic_block_forward.1} parent=0 // pred_region
    _
  $region13: #{basic_block_forward.1} parent=0 // pred_fallthru
    _
  // Predicated region
  $region14: #{basic_block_forward.1} parent=0 // pred_check
    _
  $region15: #{basic_block_forward.1} parent=0 // pred_check_branch
    %20 = sbr.rel (0) target = $region17
  $region16: #{basic_block_forward.1} parent=0 // pred_region
    _
  $region17: #{basic_block_forward.1} parent=0 // pred_fallthru
    _
  // Predicated region
  $region18: #{basic_block_forward.1} parent=0 // pred_check
    _
  $region19: #{basic_block_forward.1} parent=0 // pred_check_branch
    %22 = sbr.rel (0) target = $region21
  $region20: #{basic_block_forward.1} parent=0 // pred_region
    _
  $region21: #{basic_block_forward.1} parent=0 // pred_fallthru
    _
  // Predicated region
  $region22: #{basic_block_forward.1} parent=0 // pred_check
    _
  $region23: #{basic_block_forward.1} parent=0 // pred_check_branch
    %24 = sbr.rel (0) target = $region25
  $region24: #{basic_block_forward.1} parent=0 // pred_region
    _
  $region25: #{basic_block_forward.1} parent=0 // pred_fallthru
    _
  // Predicated region
  $region26: #{basic_block_forward.1} parent=0 // pred_check
    _
  $region27: #{basic_block_forward.1} parent=0 // pred_check_branch
    %26 = sbr.rel (0) target = $region29
  $region28: #{basic_block_forward.1} parent=0 // pred_region
    _
  $region29: #{basic_block_forward.1} parent=0 // pred_fallthru
    _
  // Predicated region
  $region30: #{basic_block_forward.1} parent=0 // pred_check
    _
  $region31: #{basic_block_forward.1} parent=0 // pred_check_branch
    %28 = sbr.rel (0) target = $region33
  $region32: #{basic_block_forward.1} parent=0 // pred_region
    _
  $region33: #{basic_block_forward.1} parent=0 // pred_fallthru
    _
  %29 = vst [vmem:[#allocation2] sm:$0xff] 0.0
  %30 = vst [vmem:[#allocation2 + $0x8] sm:$0xff] 0.0
  %31 = vst [vmem:[#allocation2 + $0x10] sm:$0xff] 0.0
  %32 = vst [vmem:[#allocation2 + $0x18] sm:$0xff] 0.0
  %33 = vst [vmem:[#allocation2 + $0x20] sm:$0xff] 0.0
  %34 = vst [vmem:[#allocation2 + $0x28] sm:$0xff] 0.0
  %35 = vst [vmem:[#allocation2 + $0x30] sm:$0xff] 0.0
  %36 = vst [vmem:[#allocation2 + $0x38] sm:$0xff] 0.0
  %v37 = vld [vmem:[%s0] sm:$0xff]
  %v38 = vld [vmem:[%s0 + $0x8] sm:$0xff]
  %39 = vst [vmem:[#allocation2 + $0x8] sm:$0xff] %v37
  %40 = vst [vmem:[#allocation2 + $0x10] sm:$0xff] %v38
  %s41 = scalar_lea.vmem %s0, 16
  %v42 = vld [vmem:[%s41] sm:$0xff]
  %v43 = vld [vmem:[%s41 + $0x8] sm:$0xff]
  %s44 = scalar_lea.vmem [#allocation2], 32
  %45 = vst [vmem:[%s44 + $0x8] sm:$0xff] %v42
  %46 = vst [vmem:[%s44 + $0x10] sm:$0xff] %v43
  %v47 = vld [vmem:[#allocation2] sm:$0xff]
  %v48 = vld [vmem:[#allocation2 + $0x8] sm:$0xff]
  %v49 = vld [vmem:[#allocation2 + $0x10] sm:$0xff]
  %v50 = vld [vmem:[%s7] ss:$4 sm:$0x3]
  %v52 = vperm.slane %v50, 0
  %v53 = vperm.slane %v50, 1
  %54 = vrot.lane.b32.xlu0 %v52, 111
  %v55 = vpop.permute.xlu0 %54
  %56 = vrot.lane.b32.xlu0 %v53, 111
  %v57 = vpop.permute.xlu0 %56
  %vm58 = vcmask 908288
  %v59 = vsel %vm58, %v55, %v57
  %v63 = vmul.f32 %v47, %v55
  %v64 = vmul.f32 %v48, %v59
  %v65 = vmul.f32 %v49, %v57
  %69 = vrot.lane.b32.xlu0 %v63, 17
  %v70 = vpop.permute.xlu0 %69
  %71 = vrot.lane.b32.xlu0 %v64, 17
  %v72 = vpop.permute.xlu0 %71
  %73 = vrot.lane.b32.xlu0 %v65, 17
  %v74 = vpop.permute.xlu0 %73
  %vm75 = vcmask 138240
  %v76 = vsel %vm75, %v70, %v72
  %v77 = vsel %vm75, %v72, %v74
  %80 = vst [vmem:[#allocation3] sm:$0xff] %v76
  %81 = vst [vmem:[#allocation3 + $0x8] sm:$0xff] %v77
  %v82 = vld [vmem:[%s44] sm:$0xff]
  %v83 = vld [vmem:[%s44 + $0x8] sm:$0xff]
  %v84 = vld [vmem:[%s44 + $0x10] sm:$0xff]
  %v85 = vld [vmem:[%s7] ss:$4 sm:$0x3]
  %v87 = vperm.slane %v85, 0
  %v88 = vperm.slane %v85, 1
  %89 = vrot.lane.b32.xlu0 %v87, 111
  %v90 = vpop.permute.xlu0 %89
  %91 = vrot.lane.b32.xlu0 %v88, 111
  %v92 = vpop.permute.xlu0 %91
  %v93 = vsel %vm58, %v90, %v92
  %v97 = vmul.f32 %v82, %v90
  %v98 = vmul.f32 %v83, %v93
  %v99 = vmul.f32 %v84, %v92
  %103 = vrot.lane.b32.xlu0 %v97, 17
  %v104 = vpop.permute.xlu0 %103
  %105 = vrot.lane.b32.xlu0 %v98, 17
  %v106 = vpop.permute.xlu0 %105
  %107 = vrot.lane.b32.xlu0 %v99, 17
  %v108 = vpop.permute.xlu0 %107
  %v109 = vsel %vm75, %v104, %v106
  %v110 = vsel %vm75, %v106, %v108
  %113 = vst [vmem:[#allocation3 + $0x10] sm:$0xff] %v109
  %114 = vst [vmem:[#allocation3 + $0x18] sm:$0xff] %v110
  %v115 = vld [vmem:[#allocation2] sm:$0xff]
  %v116 = vld [vmem:[#allocation2 + $0x8] sm:$0xff]
  %v117 = vld [vmem:[#allocation2 + $0x10] sm:$0xff]
  %121 = vrot.lane.b32.xlu0 %v115, 16
  %v122 = vpop.permute.xlu0 %121
  %123 = vrot.lane.b32.xlu0 %v116, 16
  %v124 = vpop.permute.xlu0 %123
  %125 = vrot.lane.b32.xlu0 %v117, 16
  %v126 = vpop.permute.xlu0 %125
  %vm127 = vcmask 130048
  %v128 = vsel %vm127, %v122, %v124
  %v129 = vsel %vm127, %v124, %v126
  %132 = vst [vmem:[#allocation3 + $0x20] sm:$0xff] %v128
  %133 = vst [vmem:[#allocation3 + $0x28] sm:$0xff] %v129
  %v134 = vld [vmem:[%s44] sm:$0xff]
  %v135 = vld [vmem:[%s44 + $0x8] sm:$0xff]
  %v136 = vld [vmem:[%s44 + $0x10] sm:$0xff]
  %140 = vrot.lane.b32.xlu0 %v134, 16
  %v141 = vpop.permute.xlu0 %140
  %142 = vrot.lane.b32.xlu0 %v135, 16
  %v143 = vpop.permute.xlu0 %142
  %144 = vrot.lane.b32.xlu0 %v136, 16
  %v145 = vpop.permute.xlu0 %144
  %v146 = vsel %vm127, %v141, %v143
  %v147 = vsel %vm127, %v143, %v145
  %150 = vst [vmem:[#allocation3 + $0x30] sm:$0xff] %v146
  %151 = vst [vmem:[#allocation3 + $0x38] sm:$0xff] %v147
  %v152 = vld [vmem:[#allocation2] sm:$0xff]
  %v153 = vld [vmem:[#allocation2 + $0x8] sm:$0xff]
  %v154 = vld [vmem:[#allocation2 + $0x10] sm:$0xff]
  %s155 = scalar_lea.vmem %s7, 2
  %v156 = vld [vmem:[%s155] ss:$4 sm:$0x3]
  %v158 = vperm.slane %v156, 0
  %v159 = vperm.slane %v156, 1
  %160 = vrot.lane.b32.xlu0 %v158, 113
  %v161 = vpop.permute.xlu0 %160
  %162 = vrot.lane.b32.xlu0 %v159, 113
  %v163 = vpop.permute.xlu0 %162
  %vm164 = vcmask 924672
  %v165 = vsel %vm164, %v161, %v163
  %v169 = vmul.f32 %v152, %v161
  %v170 = vmul.f32 %v153, %v165
  %v171 = vmul.f32 %v154, %v163
  %175 = vrot.lane.b32.xlu0 %v169, 15
  %v176 = vpop.permute.xlu0 %175
  %177 = vrot.lane.b32.xlu0 %v170, 15
  %v178 = vpop.permute.xlu0 %177
  %179 = vrot.lane.b32.xlu0 %v171, 15
  %v180 = vpop.permute.xlu0 %179
  %vm181 = vcmask 121856
  %v182 = vsel %vm181, %v176, %v178
  %v183 = vsel %vm181, %v178, %v180
  %186 = vst [vmem:[#allocation3 + $0x40] sm:$0xff] %v182
  %187 = vst [vmem:[#allocation3 + $0x48] sm:$0xff] %v183
  %v188 = vld [vmem:[%s44] sm:$0xff]
  %v189 = vld [vmem:[%s44 + $0x8] sm:$0xff]
  %v190 = vld [vmem:[%s44 + $0x10] sm:$0xff]
  %v191 = vld [vmem:[%s155] ss:$4 sm:$0x3]
  %v193 = vperm.slane %v191, 0
  %v194 = vperm.slane %v191, 1
  %195 = vrot.lane.b32.xlu0 %v193, 113
  %v196 = vpop.permute.xlu0 %195
  %197 = vrot.lane.b32.xlu0 %v194, 113
  %v198 = vpop.permute.xlu0 %197
  %v199 = vsel %vm164, %v196, %v198
  %v203 = vmul.f32 %v188, %v196
  %v204 = vmul.f32 %v189, %v199
  %v205 = vmul.f32 %v190, %v198
  %209 = vrot.lane.b32.xlu0 %v203, 15
  %v210 = vpop.permute.xlu0 %209
  %211 = vrot.lane.b32.xlu0 %v204, 15
  %v212 = vpop.permute.xlu0 %211
  %213 = vrot.lane.b32.xlu0 %v205, 15
  %v214 = vpop.permute.xlu0 %213
  %v215 = vsel %vm181, %v210, %v212
  %v216 = vsel %vm181, %v212, %v214
  %219 = vst [vmem:[#allocation3 + $0x50] sm:$0xff] %v215
  %220 = vst [vmem:[#allocation3 + $0x58] sm:$0xff] %v216
  %v221 = vld [vmem:[#allocation2] sm:$0xff]
  %v222 = vld [vmem:[#allocation2 + $0x8] sm:$0xff]
  %v223 = vld [vmem:[#allocation2 + $0x10] sm:$0xff]
  %v224 = vld [vmem:[%s7] ss:$4 sm:$0x3]
  %v226 = vperm.slane %v224, 0
  %v227 = vperm.slane %v224, 1
  %228 = vrot.lane.b32.xlu0 %v226, 127
  %v229 = vpop.permute.xlu0 %228
  %230 = vrot.lane.b32.xlu0 %v227, 127
  %v231 = vpop.permute.xlu0 %230
  %vm232 = vcmask 1039360
  %v233 = vsel %vm232, %v229, %v231
  %v237 = vmul.f32 %v221, %v229
  %v238 = vmul.f32 %v222, %v233
  %v239 = vmul.f32 %v223, %v231
  %243 = vrot.lane.b32.xlu0 %v237, 1
  %v244 = vpop.permute.xlu0 %243
  %245 = vrot.lane.b32.xlu0 %v238, 1
  %v246 = vpop.permute.xlu0 %245
  %247 = vrot.lane.b32.xlu0 %v239, 1
  %v248 = vpop.permute.xlu0 %247
  %vm249 = vcmask 7168
  %v250 = vsel %vm249, %v244, %v246
  %v251 = vsel %vm249, %v246, %v248
  %254 = vst [vmem:[#allocation3 + $0x60] sm:$0xff] %v250
  %255 = vst [vmem:[#allocation3 + $0x68] sm:$0xff] %v251
  %v256 = vld [vmem:[%s44] sm:$0xff]
  %v257 = vld [vmem:[%s44 + $0x8] sm:$0xff]
  %v258 = vld [vmem:[%s44 + $0x10] sm:$0xff]
  %v259 = vld [vmem:[%s7] ss:$4 sm:$0x3]
  %v261 = vperm.slane %v259, 0
  %v262 = vperm.slane %v259, 1
  %263 = vrot.lane.b32.xlu0 %v261, 127
  %v264 = vpop.permute.xlu0 %263
  %265 = vrot.lane.b32.xlu0 %v262, 127
  %v266 = vpop.permute.xlu0 %265
  %v267 = vsel %vm232, %v264, %v266
  %v271 = vmul.f32 %v256, %v264
  %v272 = vmul.f32 %v257, %v267
  %v273 = vmul.f32 %v258, %v266
  %277 = vrot.lane.b32.xlu0 %v271, 1
  %v278 = vpop.permute.xlu0 %277
  %279 = vrot.lane.b32.xlu0 %v272, 1
  %v280 = vpop.permute.xlu0 %279
  %281 = vrot.lane.b32.xlu0 %v273, 1
  %v282 = vpop.permute.xlu0 %281
  %v283 = vsel %vm249, %v278, %v280
  %v284 = vsel %vm249, %v280, %v282
  %287 = vst [vmem:[#allocation3 + $0x70] sm:$0xff] %v283
  %288 = vst [vmem:[#allocation3 + $0x78] sm:$0xff] %v284
  %v289 = vld [vmem:[#allocation2 + $0x8] sm:$0xff]
  %v290 = vld [vmem:[#allocation2 + $0x10] sm:$0xff]
  %291 = vst [vmem:[#allocation3 + $0x80] sm:$0xff] %v289
  %292 = vst [vmem:[#allocation3 + $0x88] sm:$0xff] %v290
  %v293 = vld [vmem:[%s44 + $0x8] sm:$0xff]
  %v294 = vld [vmem:[%s44 + $0x10] sm:$0xff]
  %295 = vst [vmem:[#allocation3 + $0x90] sm:$0xff] %v293
  %296 = vst [vmem:[#allocation3 + $0x98] sm:$0xff] %v294
  %v297 = vld [vmem:[#allocation2 + $0x8] sm:$0xff]
  %v298 = vld [vmem:[#allocation2 + $0x10] sm:$0xff]
  %v299 = vld [vmem:[#allocation2 + $0x18] sm:$0xff]
  %v300 = vld [vmem:[%s155] ss:$4 sm:$0x3]
  %v302 = vperm.slane %v300, 0
  %v303 = vperm.slane %v300, 1
  %304 = vrot.lane.b32.xlu0 %v302, 1
  %v305 = vpop.permute.xlu0 %304
  %306 = vrot.lane.b32.xlu0 %v303, 1
  %v307 = vpop.permute.xlu0 %306
  %v308 = vsel %vm249, %v305, %v307
  %v312 = vmul.f32 %v297, %v305
  %v313 = vmul.f32 %v298, %v308
  %v314 = vmul.f32 %v299, %v307
  %318 = vrot.lane.b32.xlu0 %v312, 127
  %v319 = vpop.permute.xlu0 %318
  %320 = vrot.lane.b32.xlu0 %v313, 127
  %v321 = vpop.permute.xlu0 %320
  %322 = vrot.lane.b32.xlu0 %v314, 127
  %v323 = vpop.permute.xlu0 %322
  %v324 = vsel %vm232, %v319, %v321
  %v325 = vsel %vm232, %v321, %v323
  %328 = vst [vmem:[#allocation3 + $0xa0] sm:$0xff] %v324
  %329 = vst [vmem:[#allocation3 + $0xa8] sm:$0xff] %v325
  %v330 = vld [vmem:[%s44 + $0x8] sm:$0xff]
  %v331 = vld [vmem:[%s44 + $0x10] sm:$0xff]
  %v332 = vld [vmem:[%s44 + $0x18] sm:$0xff]
  %v333 = vld [vmem:[%s155] ss:$4 sm:$0x3]
  %v335 = vperm.slane %v333, 0
  %v336 = vperm.slane %v333, 1
  %337 = vrot.lane.b32.xlu0 %v335, 1
  %v338 = vpop.permute.xlu0 %337
  %339 = vrot.lane.b32.xlu0 %v336, 1
  %v340 = vpop.permute.xlu0 %339
  %v341 = vsel %vm249, %v338, %v340
  %v345 = vmul.f32 %v330, %v338
  %v346 = vmul.f32 %v331, %v341
  %v347 = vmul.f32 %v332, %v340
  %351 = vrot.lane.b32.xlu0 %v345, 127
  %v352 = vpop.permute.xlu0 %351
  %353 = vrot.lane.b32.xlu0 %v346, 127
  %v354 = vpop.permute.xlu0 %353
  %355 = vrot.lane.b32.xlu0 %v347, 127
  %v356 = vpop.permute.xlu0 %355
  %v357 = vsel %vm232, %v352, %v354
  %v358 = vsel %vm232, %v354, %v356
  %361 = vst [vmem:[#allocation3 + $0xb0] sm:$0xff] %v357
  %362 = vst [vmem:[#allocation3 + $0xb8] sm:$0xff] %v358
  %v363 = vld [vmem:[#allocation2 + $0x8] sm:$0xff]
  %v364 = vld [vmem:[#allocation2 + $0x10] sm:$0xff]
  %v365 = vld [vmem:[#allocation2 + $0x18] sm:$0xff]
  %v366 = vld [vmem:[%s7] ss:$4 sm:$0x3]
  %v368 = vperm.slane %v366, 0
  %v369 = vperm.slane %v366, 1
  %370 = vrot.lane.b32.xlu0 %v368, 15
  %v371 = vpop.permute.xlu0 %370
  %372 = vrot.lane.b32.xlu0 %v369, 15
  %v373 = vpop.permute.xlu0 %372
  %v374 = vsel %vm181, %v371, %v373
  %v378 = vmul.f32 %v363, %v371
  %v379 = vmul.f32 %v364, %v374
  %v380 = vmul.f32 %v365, %v373
  %384 = vrot.lane.b32.xlu0 %v378, 113
  %v385 = vpop.permute.xlu0 %384
  %386 = vrot.lane.b32.xlu0 %v379, 113
  %v387 = vpop.permute.xlu0 %386
  %388 = vrot.lane.b32.xlu0 %v380, 113
  %v389 = vpop.permute.xlu0 %388
  %v390 = vsel %vm164, %v385, %v387
  %v391 = vsel %vm164, %v387, %v389
  %394 = vst [vmem:[#allocation3 + $0xc0] sm:$0xff] %v390
  %395 = vst [vmem:[#allocation3 + $0xc8] sm:$0xff] %v391
  %v396 = vld [vmem:[%s44 + $0x8] sm:$0xff]
  %v397 = vld [vmem:[%s44 + $0x10] sm:$0xff]
  %v398 = vld [vmem:[%s44 + $0x18] sm:$0xff]
  %v399 = vld [vmem:[%s7] ss:$4 sm:$0x3]
  %v401 = vperm.slane %v399, 0
  %v402 = vperm.slane %v399, 1
  %403 = vrot.lane.b32.xlu0 %v401, 15
  %v404 = vpop.permute.xlu0 %403
  %405 = vrot.lane.b32.xlu0 %v402, 15
  %v406 = vpop.permute.xlu0 %405
  %v407 = vsel %vm181, %v404, %v406
  %v411 = vmul.f32 %v396, %v404
  %v412 = vmul.f32 %v397, %v407
  %v413 = vmul.f32 %v398, %v406
  %417 = vrot.lane.b32.xlu0 %v411, 113
  %v418 = vpop.permute.xlu0 %417
  %419 = vrot.lane.b32.xlu0 %v412, 113
  %v420 = vpop.permute.xlu0 %419
  %421 = vrot.lane.b32.xlu0 %v413, 113
  %v422 = vpop.permute.xlu0 %421
  %v423 = vsel %vm164, %v418, %v420
  %v424 = vsel %vm164, %v420, %v422
  %427 = vst [vmem:[#allocation3 + $0xd0] sm:$0xff] %v423
  %428 = vst [vmem:[#allocation3 + $0xd8] sm:$0xff] %v424
  %v429 = vld [vmem:[#allocation2 + $0x8] sm:$0xff]
  %v430 = vld [vmem:[#allocation2 + $0x10] sm:$0xff]
  %v431 = vld [vmem:[#allocation2 + $0x18] sm:$0xff]
  %435 = vrot.lane.b32.xlu0 %v429, 112
  %v436 = vpop.permute.xlu0 %435
  %437 = vrot.lane.b32.xlu0 %v430, 112
  %v438 = vpop.permute.xlu0 %437
  %439 = vrot.lane.b32.xlu0 %v431, 112
  %v440 = vpop.permute.xlu0 %439
  %vm441 = vcmask 916480
  %v442 = vsel %vm441, %v436, %v438
  %v443 = vsel %vm441, %v438, %v440
  %446 = vst [vmem:[#allocation3 + $0xe0] sm:$0xff] %v442
  %447 = vst [vmem:[#allocation3 + $0xe8] sm:$0xff] %v443
  %v448 = vld [vmem:[%s44 + $0x8] sm:$0xff]
  %v449 = vld [vmem:[%s44 + $0x10] sm:$0xff]
  %v450 = vld [vmem:[%s44 + $0x18] sm:$0xff]
  %454 = vrot.lane.b32.xlu0 %v448, 112
  %v455 = vpop.permute.xlu0 %454
  %456 = vrot.lane.b32.xlu0 %v449, 112
  %v457 = vpop.permute.xlu0 %456
  %458 = vrot.lane.b32.xlu0 %v450, 112
  %v459 = vpop.permute.xlu0 %458
  %v460 = vsel %vm441, %v455, %v457
  %v461 = vsel %vm441, %v457, %v459
  %464 = vst [vmem:[#allocation3 + $0xf0] sm:$0xff] %v460
  %465 = vst [vmem:[#allocation3 + $0xf8] sm:$0xff] %v461
  %v466 = vld [vmem:[#allocation2 + $0x8] sm:$0xff]
  %v467 = vld [vmem:[#allocation2 + $0x10] sm:$0xff]
  %v468 = vld [vmem:[#allocation2 + $0x18] sm:$0xff]
  %v469 = vld [vmem:[%s155] ss:$4 sm:$0x3]
  %v471 = vperm.slane %v469, 0
  %v472 = vperm.slane %v469, 1
  %473 = vrot.lane.b32.xlu0 %v471, 17
  %v474 = vpop.permute.xlu0 %473
  %475 = vrot.lane.b32.xlu0 %v472, 17
  %v476 = vpop.permute.xlu0 %475
  %v477 = vsel %vm75, %v474, %v476
  %v481 = vmul.f32 %v466, %v474
  %v482 = vmul.f32 %v467, %v477
  %v483 = vmul.f32 %v468, %v476
  %487 = vrot.lane.b32.xlu0 %v481, 111
  %v488 = vpop.permute.xlu0 %487
  %489 = vrot.lane.b32.xlu0 %v482, 111
  %v490 = vpop.permute.xlu0 %489
  %491 = vrot.lane.b32.xlu0 %v483, 111
  %v492 = vpop.permute.xlu0 %491
  %v493 = vsel %vm58, %v488, %v490
  %v494 = vsel %vm58, %v490, %v492
  %497 = vst [vmem:[#allocation3 + $0x100] sm:$0xff] %v493
  %498 = vst [vmem:[#allocation3 + $0x108] sm:$0xff] %v494
  %v499 = vld [vmem:[%s44 + $0x8] sm:$0xff]
  %v500 = vld [vmem:[%s44 + $0x10] sm:$0xff]
  %v501 = vld [vmem:[%s44 + $0x18] sm:$0xff]
  %v502 = vld [vmem:[%s155] ss:$4 sm:$0x3]
  %v504 = vperm.slane %v502, 0
  %v505 = vperm.slane %v502, 1
  %506 = vrot.lane.b32.xlu0 %v504, 17
  %v507 = vpop.permute.xlu0 %506
  %508 = vrot.lane.b32.xlu0 %v505, 17
  %v509 = vpop.permute.xlu0 %508
  %v510 = vsel %vm75, %v507, %v509
  %v514 = vmul.f32 %v499, %v507
  %v515 = vmul.f32 %v500, %v510
  %v516 = vmul.f32 %v501, %v509
  %520 = vrot.lane.b32.xlu0 %v514, 111
  %v521 = vpop.permute.xlu0 %520
  %522 = vrot.lane.b32.xlu0 %v515, 111
  %v523 = vpop.permute.xlu0 %522
  %524 = vrot.lane.b32.xlu0 %v516, 111
  %v525 = vpop.permute.xlu0 %524
  %v526 = vsel %vm58, %v521, %v523
  %v527 = vsel %vm58, %v523, %v525
  %530 = vst [vmem:[#allocation3 + $0x110] sm:$0xff] %v526
  %531 = vst [vmem:[#allocation3 + $0x118] sm:$0xff] %v527
  %v532 = vld [vmem:[%s1] sm:$0xff]
  %v533 = vld [vmem:[#allocation3] sm:$0xff]
  %v534 = vld [vmem:[#allocation3 + $0x8] sm:$0xff]
  %v535 = vld [vmem:[#allocation3 + $0x10] sm:$0xff]
  %v536 = vld [vmem:[#allocation3 + $0x18] sm:$0xff]
  %v537 = vld [vmem:[#allocation3 + $0x20] sm:$0xff]
  %v538 = vld [vmem:[#allocation3 + $0x28] sm:$0xff]
  %v539 = vld [vmem:[#allocation3 + $0x30] sm:$0xff]
  %v540 = vld [vmem:[#allocation3 + $0x38] sm:$0xff]
  %v541 = vld [vmem:[#allocation3 + $0x40] sm:$0xff]
  %v542 = vld [vmem:[#allocation3 + $0x48] sm:$0xff]
  %v543 = vld [vmem:[#allocation3 + $0x50] sm:$0xff]
  %v544 = vld [vmem:[#allocation3 + $0x58] sm:$0xff]
  %v545 = vld [vmem:[#allocation3 + $0x60] sm:$0xff]
  %v546 = vld [vmem:[#allocation3 + $0x68] sm:$0xff]
  %v547 = vld [vmem:[#allocation3 + $0x70] sm:$0xff]
  %v548 = vld [vmem:[#allocation3 + $0x78] sm:$0xff]
  %v549 = vld [vmem:[#allocation3 + $0x80] sm:$0xff]
  %v550 = vld [vmem:[#allocation3 + $0x88] sm:$0xff]
  %v551 = vld [vmem:[#allocation3 + $0x90] sm:$0xff]
  %v552 = vld [vmem:[#allocation3 + $0x98] sm:$0xff]
  %v553 = vld [vmem:[#allocation3 + $0xa0] sm:$0xff]
  %v554 = vld [vmem:[#allocation3 + $0xa8] sm:$0xff]
  %v555 = vld [vmem:[#allocation3 + $0xb0] sm:$0xff]
  %v556 = vld [vmem:[#allocation3 + $0xb8] sm:$0xff]
  %v557 = vld [vmem:[#allocation3 + $0xc0] sm:$0xff]
  %v558 = vld [vmem:[#allocation3 + $0xc8] sm:$0xff]
  %v559 = vld [vmem:[#allocation3 + $0xd0] sm:$0xff]
  %v560 = vld [vmem:[#allocation3 + $0xd8] sm:$0xff]
  %v561 = vld [vmem:[#allocation3 + $0xe0] sm:$0xff]
  %v562 = vld [vmem:[#allocation3 + $0xe8] sm:$0xff]
  %v563 = vld [vmem:[#allocation3 + $0xf0] sm:$0xff]
  %v564 = vld [vmem:[#allocation3 + $0xf8] sm:$0xff]
  %v565 = vld [vmem:[#allocation3 + $0x100] sm:$0xff]
  %v566 = vld [vmem:[#allocation3 + $0x108] sm:$0xff]
  %v567 = vld [vmem:[#allocation3 + $0x110] sm:$0xff]
  %v568 = vld [vmem:[#allocation3 + $0x118] sm:$0xff]
  %vm569 = vcmask 588800
  %v571 = vsel %vm569, %v532, 0
  %573 = vmatpush.msra.mxu0 0.0
  %574 = vmatpush.msra.mxu0 0.0
  %575 = vmatpush.msra.mxu0 0.0
  %576 = vmatpush.msra.mxu0 0.0
  %577 = vmatpush.msra.mxu0 0.0
  %578 = vmatpush.msra.mxu0 0.0
  %579 = vmatpush.msra.mxu0 0.0
  %580 = vmatpush.msra.mxu0 %v565
  %581 = vmatpush.msra.mxu0 %v561
  %582 = vmatpush.msra.mxu0 %v557
  %583 = vmatpush.msra.mxu0 %v553
  %584 = vmatpush.msra.mxu0 %v549
  %585 = vmatpush.msra.mxu0 %v545
  %586 = vmatpush.msra.mxu0 %v541
  %587 = vmatpush.msra.mxu0 %v537
  %588 = vmatpush.msra.mxu0 %v533
  %589 = vmatmul.f32.gmra.mxu0 %v571
  %v590 = vpop.f32.mrf.mxu0
  %v591 = vadd.f32 0.0, %v590
  %592 = vdwg.mxu0
  %593 = vmatpush.msra.mxu0 0.0
  %594 = vmatpush.msra.mxu0 0.0
  %595 = vmatpush.msra.mxu0 0.0
  %596 = vmatpush.msra.mxu0 0.0
  %597 = vmatpush.msra.mxu0 0.0
  %598 = vmatpush.msra.mxu0 0.0
  %599 = vmatpush.msra.mxu0 0.0
  %600 = vmatpush.msra.mxu0 %v566
  %601 = vmatpush.msra.mxu0 %v562
  %602 = vmatpush.msra.mxu0 %v558
  %603 = vmatpush.msra.mxu0 %v554
  %604 = vmatpush.msra.mxu0 %v550
  %605 = vmatpush.msra.mxu0 %v546
  %606 = vmatpush.msra.mxu0 %v542
  %607 = vmatpush.msra.mxu0 %v538
  %608 = vmatpush.msra.mxu0 %v534
  %609 = vmatmul.f32.gmra.mxu0 %v571
  %v610 = vpop.f32.mrf.mxu0
  %v611 = vadd.f32 0.0, %v610
  %612 = vdwg.mxu0
  %613 = vmatpush.msra.mxu0 0.0
  %614 = vmatpush.msra.mxu0 0.0
  %615 = vmatpush.msra.mxu0 0.0
  %616 = vmatpush.msra.mxu0 0.0
  %617 = vmatpush.msra.mxu0 0.0
  %618 = vmatpush.msra.mxu0 0.0
  %619 = vmatpush.msra.mxu0 0.0
  %620 = vmatpush.msra.mxu0 %v567
  %621 = vmatpush.msra.mxu0 %v563
  %622 = vmatpush.msra.mxu0 %v559
  %623 = vmatpush.msra.mxu0 %v555
  %624 = vmatpush.msra.mxu0 %v551
  %625 = vmatpush.msra.mxu0 %v547
  %626 = vmatpush.msra.mxu0 %v543
  %627 = vmatpush.msra.mxu0 %v539
  %628 = vmatpush.msra.mxu0 %v535
  %629 = vmatmul.f32.gmra.mxu0 %v571
  %v630 = vpop.f32.mrf.mxu0
  %v631 = vadd.f32 0.0, %v630
  %632 = vdwg.mxu0
  %633 = vmatpush.msra.mxu0 0.0
  %634 = vmatpush.msra.mxu0 0.0
  %635 = vmatpush.msra.mxu0 0.0
  %636 = vmatpush.msra.mxu0 0.0
  %637 = vmatpush.msra.mxu0 0.0
  %638 = vmatpush.msra.mxu0 0.0
  %639 = vmatpush.msra.mxu0 0.0
  %640 = vmatpush.msra.mxu0 %v568
  %641 = vmatpush.msra.mxu0 %v564
  %642 = vmatpush.msra.mxu0 %v560
  %643 = vmatpush.msra.mxu0 %v556
  %644 = vmatpush.msra.mxu0 %v552
  %645 = vmatpush.msra.mxu0 %v548
  %646 = vmatpush.msra.mxu0 %v544
  %647 = vmatpush.msra.mxu0 %v540
  %648 = vmatpush.msra.mxu0 %v536
  %649 = vmatmul.f32.gmra.mxu0 %v571
  %v650 = vpop.f32.mrf.mxu0
  %v651 = vadd.f32 0.0, %v650
  %652 = vdwg.mxu0
  %v653 = vadd.f32 %v591, %v611
  %v654 = vadd.f32 %v653, %v631
  %v655 = vadd.f32 %v654, %v651
  %656 = vadd.xlane.f32.xlu0 %v655
  %v657 = vpop.xlane.xlu0 %656
  %658 = vst [vmem:[#allocation2 + $0x8] sm:$0xff] %v591
  %659 = vst [vmem:[#allocation2 + $0x10] sm:$0xff] %v611
  %660 = vst [vmem:[%s44 + $0x8] sm:$0xff] %v631
  %661 = vst [vmem:[%s44 + $0x10] sm:$0xff] %v651
  %v662 = vmul.f32 %v657, 0.001953125
  %v663 = vld [vmem:[#allocation2 + $0x8] sm:$0xff]
  %v664 = vld [vmem:[#allocation2 + $0x10] sm:$0xff]
  %v665 = vsub.f32 %v663, %v662
  %v666 = vsub.f32 %v664, %v662
  %v667 = vmul.f32 %v665, %v665
  %v668 = vmul.f32 %v666, %v666
  %v669 = vadd.f32 %v667, %v668
  %670 = vadd.xlane.f32.xlu0 %v669
  %v671 = vpop.xlane.xlu0 %670
  %v672 = vadd.f32 %v671, 0.0
  %v673 = vld [vmem:[%s44 + $0x8] sm:$0xff]
  %v674 = vld [vmem:[%s44 + $0x10] sm:$0xff]
  %v675 = vsub.f32 %v673, %v662
  %v676 = vsub.f32 %v674, %v662
  %v677 = vmul.f32 %v675, %v675
  %v678 = vmul.f32 %v676, %v676
  %v679 = vadd.f32 %v677, %v678
  %680 = vadd.xlane.f32.xlu0 %v679
  %v681 = vpop.xlane.xlu0 %680
  %v682 = vadd.f32 %v672, %v681
  %v683 = vmul.f32 %v682, 0.001953125
  %v684 = vld [vmem:[%s2] sm:$0xff]
  %v685 = vadd.f32 %v683, 1e-05
  %v686 = vrsqrt.pop %v685
  %v687 = vmul.f32 %v686, %v685
  %v688 = vmul.f32 %v687, %v686
  %v689 = vmul.f32 0.5, %v688
  %v690 = vsub.f32 1.5, %v689
  %v691 = vmul.f32 %v686, %v690
  %vm692 = vweird.f32 %v685
  %vm693 = vweird.f32 %v686
  %vm694 = vmor %vm692, %vm693
  %v695 = vsel %vm694, %v686, %v691
  %v696 = vmul.f32 %v684, %v695
  %v697 = vld [vmem:[%s3] sm:$0xff]
  %v698 = vmul.f32 %v662, %v696
  %v699 = vsub.f32 %v697, %v698
  %701 = vset.pattern.permute.xlu0 0
  %702 = vperm.xlu0 %701, %v696
  %v703 = vpop.permute.xlu0 %702
  %v705 = vmul.f32 %v663, %v703
  %v706 = vmul.f32 %v664, %v703
  %708 = vset.pattern.permute.xlu0 0
  %709 = vperm.xlu0 %708, %v699
  %v710 = vpop.permute.xlu0 %709
  %v712 = vadd.f32 %v705, %v710
  %v713 = vadd.f32 %v706, %v710
  %v714 = vmin.f32 %v712, 0.0
  %v715 = vmin.f32 %v713, 0.0
  %v716 = vmul.f32 %v714, 0.5
  %v717 = vmul.f32 %v715, 0.5
  %v718 = vtanh.pop %v716
  %v719 = vtanh.pop %v717
  %v720 = vmul.f32 %v718, 2.0
  %v721 = vmul.f32 %v719, 2.0
  %v722 = vsub.f32 1.0, %v718
  %v723 = vsub.f32 1.0, %v719
  %v724 = vrcp.pop %v722
  %v725 = vmul.f32 %v722, %v724
  %v726 = vsub.f32 1.0, %v725
  %v727 = vmul.f32 %v724, %v726
  %v728 = vadd.f32 %v724, %v727
  %vm729 = vweird.f32 %v722
  %vm730 = vweird.f32 %v724
  %vm731 = vmor %vm729, %vm730
  %v732 = vsel %vm731, %v724, %v728
  %v733 = vand.u32 2147483647, %v722
  %vm734 = vcmp.eq.f32.partialorder %v733, 8.507059e+37
  %v735 = vand.u32 %v722, 2147483648
  %v736 = vor.u32 1.1754944e-38, %v735
  %v737 = vsel %vm734, %v736, %v732
  %v738 = vmul.f32 %v720, %v737
  %v739 = vrcp.pop %v723
  %v740 = vmul.f32 %v723, %v739
  %v741 = vsub.f32 1.0, %v740
  %v742 = vmul.f32 %v739, %v741
  %v743 = vadd.f32 %v739, %v742
  %vm744 = vweird.f32 %v723
  %vm745 = vweird.f32 %v739
  %vm746 = vmor %vm744, %vm745
  %v747 = vsel %vm746, %v739, %v743
  %v748 = vand.u32 2147483647, %v723
  %vm749 = vcmp.eq.f32.partialorder %v748, 8.507059e+37
  %v750 = vand.u32 %v723, 2147483648
  %v751 = vor.u32 1.1754944e-38, %v750
  %v752 = vsel %vm749, %v751, %v747
  %v753 = vmul.f32 %v721, %v752
  %vm754 = vcmp.gt.f32.partialorder %v712, 0.0
  %vm755 = vcmp.gt.f32.partialorder %v713, 0.0
  %v756 = vsel %vm754, %v712, %v738
  %v757 = vsel %vm755, %v713, %v753
  %758 = vst [vmem:[#allocation2 + $0x8] sm:$0xff] %v756
  %759 = vst [vmem:[#allocation2 + $0x10] sm:$0xff] %v757
  %v760 = vld [vmem:[%s44 + $0x8] sm:$0xff]
  %v761 = vld [vmem:[%s44 + $0x10] sm:$0xff]
  %v762 = vmul.f32 %v760, %v703
  %v763 = vmul.f32 %v761, %v703
  %v764 = vadd.f32 %v762, %v710
  %v765 = vadd.f32 %v763, %v710
  %v766 = vmin.f32 %v764, 0.0
  %v767 = vmin.f32 %v765, 0.0
  %v768 = vmul.f32 %v766, 0.5
  %v769 = vmul.f32 %v767, 0.5
  %v770 = vtanh.pop %v768
  %v771 = vtanh.pop %v769
  %v772 = vmul.f32 %v770, 2.0
  %v773 = vmul.f32 %v771, 2.0
  %v774 = vsub.f32 1.0, %v770
  %v775 = vsub.f32 1.0, %v771
  %v776 = vrcp.pop %v774
  %v777 = vmul.f32 %v774, %v776
  %v778 = vsub.f32 1.0, %v777
  %v779 = vmul.f32 %v776, %v778
  %v780 = vadd.f32 %v776, %v779
  %vm781 = vweird.f32 %v774
  %vm782 = vweird.f32 %v776
  %vm783 = vmor %vm781, %vm782
  %v784 = vsel %vm783, %v776, %v780
  %v785 = vand.u32 2147483647, %v774
  %vm786 = vcmp.eq.f32.partialorder %v785, 8.507059e+37
  %v787 = vand.u32 %v774, 2147483648
  %v788 = vor.u32 1.1754944e-38, %v787
  %v789 = vsel %vm786, %v788, %v784
  %v790 = vmul.f32 %v772, %v789
  %v791 = vrcp.pop %v775
  %v792 = vmul.f32 %v775, %v791
  %v793 = vsub.f32 1.0, %v792
  %v794 = vmul.f32 %v791, %v793
  %v795 = vadd.f32 %v791, %v794
  %vm796 = vweird.f32 %v775
  %vm797 = vweird.f32 %v791
  %vm798 = vmor %vm796, %vm797
  %v799 = vsel %vm798, %v791, %v795
  %v800 = vand.u32 2147483647, %v775
  %vm801 = vcmp.eq.f32.partialorder %v800, 8.507059e+37
  %v802 = vand.u32 %v775, 2147483648
  %v803 = vor.u32 1.1754944e-38, %v802
  %v804 = vsel %vm801, %v803, %v799
  %v805 = vmul.f32 %v773, %v804
  %vm806 = vcmp.gt.f32.partialorder %v764, 0.0
  %vm807 = vcmp.gt.f32.partialorder %v765, 0.0
  %v808 = vsel %vm806, %v764, %v790
  %v809 = vsel %vm807, %v765, %v805
  %810 = vst [vmem:[%s44 + $0x8] sm:$0xff] %v808
  %811 = vst [vmem:[%s44 + $0x10] sm:$0xff] %v809
  %v812 = vld [vmem:[#allocation2] sm:$0xff]
  %v813 = vld [vmem:[#allocation2 + $0x8] sm:$0xff]
  %v814 = vld [vmem:[#allocation2 + $0x10] sm:$0xff]
  %v815 = vld [vmem:[%s7] ss:$4 sm:$0x3]
  %v817 = vperm.slane %v815, 0
  %v818 = vperm.slane %v815, 1
  %819 = vrot.lane.b32.xlu0 %v817, 111
  %v820 = vpop.permute.xlu0 %819
  %821 = vrot.lane.b32.xlu0 %v818, 111
  %v822 = vpop.permute.xlu0 %821
  %v823 = vsel %vm58, %v820, %v822
  %v827 = vmul.f32 %v812, %v820
  %v828 = vmul.f32 %v813, %v823
  %v829 = vmul.f32 %v814, %v822
  %833 = vrot.lane.b32.xlu0 %v827, 17
  %v834 = vpop.permute.xlu0 %833
  %835 = vrot.lane.b32.xlu0 %v828, 17
  %v836 = vpop.permute.xlu0 %835
  %837 = vrot.lane.b32.xlu0 %v829, 17
  %v838 = vpop.permute.xlu0 %837
  %v839 = vsel %vm75, %v834, %v836
  %v840 = vsel %vm75, %v836, %v838
  %843 = vst [vmem:[#allocation3] sm:$0xff] %v839
  %844 = vst [vmem:[#allocation3 + $0x8] sm:$0xff] %v840
  %v845 = vld [vmem:[%s44] sm:$0xff]
  %v846 = vld [vmem:[%s44 + $0x8] sm:$0xff]
  %v847 = vld [vmem:[%s44 + $0x10] sm:$0xff]
  %v848 = vld [vmem:[%s7] ss:$4 sm:$0x3]
  %v850 = vperm.slane %v848, 0
  %v851 = vperm.slane %v848, 1
  %852 = vrot.lane.b32.xlu0 %v850, 111
  %v853 = vpop.permute.xlu0 %852
  %854 = vrot.lane.b32.xlu0 %v851, 111
  %v855 = vpop.permute.xlu0 %854
  %v856 = vsel %vm58, %v853, %v855
  %v860 = vmul.f32 %v845, %v853
  %v861 = vmul.f32 %v846, %v856
  %v862 = vmul.f32 %v847, %v855
  %866 = vrot.lane.b32.xlu0 %v860, 17
  %v867 = vpop.permute.xlu0 %866
  %868 = vrot.lane.b32.xlu0 %v861, 17
  %v869 = vpop.permute.xlu0 %868
  %870 = vrot.lane.b32.xlu0 %v862, 17
  %v871 = vpop.permute.xlu0 %870
  %v872 = vsel %vm75, %v867, %v869
  %v873 = vsel %vm75, %v869, %v871
  %876 = vst [vmem:[#allocation3 + $0x10] sm:$0xff] %v872
  %877 = vst [vmem:[#allocation3 + $0x18] sm:$0xff] %v873
  %v878 = vld [vmem:[#allocation2] sm:$0xff]
  %v879 = vld [vmem:[#allocation2 + $0x8] sm:$0xff]
  %v880 = vld [vmem:[#allocation2 + $0x10] sm:$0xff]
  %884 = vrot.lane.b32.xlu0 %v878, 16
  %v885 = vpop.permute.xlu0 %884
  %886 = vrot.lane.b32.xlu0 %v879, 16
  %v887 = vpop.permute.xlu0 %886
  %888 = vrot.lane.b32.xlu0 %v880, 16
  %v889 = vpop.permute.xlu0 %888
  %v890 = vsel %vm127, %v885, %v887
  %v891 = vsel %vm127, %v887, %v889
  %894 = vst [vmem:[#allocation3 + $0x20] sm:$0xff] %v890
  %895 = vst [vmem:[#allocation3 + $0x28] sm:$0xff] %v891
  %v896 = vld [vmem:[%s44] sm:$0xff]
  %v897 = vld [vmem:[%s44 + $0x8] sm:$0xff]
  %v898 = vld [vmem:[%s44 + $0x10] sm:$0xff]
  %902 = vrot.lane.b32.xlu0 %v896, 16
  %v903 = vpop.permute.xlu0 %902
  %904 = vrot.lane.b32.xlu0 %v897, 16
  %v905 = vpop.permute.xlu0 %904
  %906 = vrot.lane.b32.xlu0 %v898, 16
  %v907 = vpop.permute.xlu0 %906
  %v908 = vsel %vm127, %v903, %v905
  %v909 = vsel %vm127, %v905, %v907
  %912 = vst [vmem:[#allocation3 + $0x30] sm:$0xff] %v908
  %913 = vst [vmem:[#allocation3 + $0x38] sm:$0xff] %v909
  %v914 = vld [vmem:[#allocation2] sm:$0xff]
  %v915 = vld [vmem:[#allocation2 + $0x8] sm:$0xff]
  %v916 = vld [vmem:[#allocation2 + $0x10] sm:$0xff]
  %v917 = vld [vmem:[%s155] ss:$4 sm:$0x3]
  %v919 = vperm.slane %v917, 0
  %v920 = vperm.slane %v917, 1
  %921 = vrot.lane.b32.xlu0 %v919, 113
  %v922 = vpop.permute.xlu0 %921
  %923 = vrot.lane.b32.xlu0 %v920, 113
  %v924 = vpop.permute.xlu0 %923
  %v925 = vsel %vm164, %v922, %v924
  %v929 = vmul.f32 %v914, %v922
  %v930 = vmul.f32 %v915, %v925
  %v931 = vmul.f32 %v916, %v924
  %935 = vrot.lane.b32.xlu0 %v929, 15
  %v936 = vpop.permute.xlu0 %935
  %937 = vrot.lane.b32.xlu0 %v930, 15
  %v938 = vpop.permute.xlu0 %937
  %939 = vrot.lane.b32.xlu0 %v931, 15
  %v940 = vpop.permute.xlu0 %939
  %v941 = vsel %vm181, %v936, %v938
  %v942 = vsel %vm181, %v938, %v940
  %945 = vst [vmem:[#allocation3 + $0x40] sm:$0xff] %v941
  %946 = vst [vmem:[#allocation3 + $0x48] sm:$0xff] %v942
  %v947 = vld [vmem:[%s44] sm:$0xff]
  %v948 = vld [vmem:[%s44 + $0x8] sm:$0xff]
  %v949 = vld [vmem:[%s44 + $0x10] sm:$0xff]
  %v950 = vld [vmem:[%s155] ss:$4 sm:$0x3]
  %v952 = vperm.slane %v950, 0
  %v953 = vperm.slane %v950, 1
  %954 = vrot.lane.b32.xlu0 %v952, 113
  %v955 = vpop.permute.xlu0 %954
  %956 = vrot.lane.b32.xlu0 %v953, 113
  %v957 = vpop.permute.xlu0 %956
  %v958 = vsel %vm164, %v955, %v957
  %v962 = vmul.f32 %v947, %v955
  %v963 = vmul.f32 %v948, %v958
  %v964 = vmul.f32 %v949, %v957
  %968 = vrot.lane.b32.xlu0 %v962, 15
  %v969 = vpop.permute.xlu0 %968
  %970 = vrot.lane.b32.xlu0 %v963, 15
  %v971 = vpop.permute.xlu0 %970
  %972 = vrot.lane.b32.xlu0 %v964, 15
  %v973 = vpop.permute.xlu0 %972
  %v974 = vsel %vm181, %v969, %v971
  %v975 = vsel %vm181, %v971, %v973
  %978 = vst [vmem:[#allocation3 + $0x50] sm:$0xff] %v974
  %979 = vst [vmem:[#allocation3 + $0x58] sm:$0xff] %v975
  %v980 = vld [vmem:[#allocation2] sm:$0xff]
  %v981 = vld [vmem:[#allocation2 + $0x8] sm:$0xff]
  %v982 = vld [vmem:[#allocation2 + $0x10] sm:$0xff]
  %v983 = vld [vmem:[%s7] ss:$4 sm:$0x3]
  %v985 = vperm.slane %v983, 0
  %v986 = vperm.slane %v983, 1
  %987 = vrot.lane.b32.xlu0 %v985, 127
  %v988 = vpop.permute.xlu0 %987
  %989 = vrot.lane.b32.xlu0 %v986, 127
  %v990 = vpop.permute.xlu0 %989
  %v991 = vsel %vm232, %v988, %v990
  %v995 = vmul.f32 %v980, %v988
  %v996 = vmul.f32 %v981, %v991
  %v997 = vmul.f32 %v982, %v990
  %1001 = vrot.lane.b32.xlu0 %v995, 1
  %v1002 = vpop.permute.xlu0 %1001
  %1003 = vrot.lane.b32.xlu0 %v996, 1
  %v1004 = vpop.permute.xlu0 %1003
  %1005 = vrot.lane.b32.xlu0 %v997, 1
  %v1006 = vpop.permute.xlu0 %1005
  %v1007 = vsel %vm249, %v1002, %v1004
  %v1008 = vsel %vm249, %v1004, %v1006
  %1011 = vst [vmem:[#allocation3 + $0x60] sm:$0xff] %v1007
  %1012 = vst [vmem:[#allocation3 + $0x68] sm:$0xff] %v1008
  %v1013 = vld [vmem:[%s44] sm:$0xff]
  %v1014 = vld [vmem:[%s44 + $0x8] sm:$0xff]
  %v1015 = vld [vmem:[%s44 + $0x10] sm:$0xff]
  %v1016 = vld [vmem:[%s7] ss:$4 sm:$0x3]
  %v1018 = vperm.slane %v1016, 0
  %v1019 = vperm.slane %v1016, 1
  %1020 = vrot.lane.b32.xlu0 %v1018, 127
  %v1021 = vpop.permute.xlu0 %1020
  %1022 = vrot.lane.b32.xlu0 %v1019, 127
  %v1023 = vpop.permute.xlu0 %1022
  %v1024 = vsel %vm232, %v1021, %v1023
  %v1028 = vmul.f32 %v1013, %v1021
  %v1029 = vmul.f32 %v1014, %v1024
  %v1030 = vmul.f32 %v1015, %v1023
  %1034 = vrot.lane.b32.xlu0 %v1028, 1
  %v1035 = vpop.permute.xlu0 %1034
  %1036 = vrot.lane.b32.xlu0 %v1029, 1
  %v1037 = vpop.permute.xlu0 %1036
  %1038 = vrot.lane.b32.xlu0 %v1030, 1
  %v1039 = vpop.permute.xlu0 %1038
  %v1040 = vsel %vm249, %v1035, %v1037
  %v1041 = vsel %vm249, %v1037, %v1039
  %1044 = vst [vmem:[#allocation3 + $0x70] sm:$0xff] %v1040
  %1045 = vst [vmem:[#allocation3 + $0x78] sm:$0xff] %v1041
  %v1046 = vld [vmem:[#allocation2 + $0x8] sm:$0xff]
  %v1047 = vld [vmem:[#allocation2 + $0x10] sm:$0xff]
  %1048 = vst [vmem:[#allocation3 + $0x80] sm:$0xff] %v1046
  %1049 = vst [vmem:[#allocation3 + $0x88] sm:$0xff] %v1047
  %v1050 = vld [vmem:[%s44 + $0x8] sm:$0xff]
  %v1051 = vld [vmem:[%s44 + $0x10] sm:$0xff]
  %1052 = vst [vmem:[#allocation3 + $0x90] sm:$0xff] %v1050
  %1053 = vst [vmem:[#allocation3 + $0x98] sm:$0xff] %v1051
  %v1054 = vld [vmem:[#allocation2 + $0x8] sm:$0xff]
  %v1055 = vld [vmem:[#allocation2 + $0x10] sm:$0xff]
  %v1056 = vld [vmem:[#allocation2 + $0x18] sm:$0xff]
  %v1057 = vld [vmem:[%s155] ss:$4 sm:$0x3]
  %v1059 = vperm.slane %v1057, 0
  %v1060 = vperm.slane %v1057, 1
  %1061 = vrot.lane.b32.xlu0 %v1059, 1
  %v1062 = vpop.permute.xlu0 %1061
  %1063 = vrot.lane.b32.xlu0 %v1060, 1
  %v1064 = vpop.permute.xlu0 %1063
  %v1065 = vsel %vm249, %v1062, %v1064
  %v1069 = vmul.f32 %v1054, %v1062
  %v1070 = vmul.f32 %v1055, %v1065
  %v1071 = vmul.f32 %v1056, %v1064
  %1075 = vrot.lane.b32.xlu0 %v1069, 127
  %v1076 = vpop.permute.xlu0 %1075
  %1077 = vrot.lane.b32.xlu0 %v1070, 127
  %v1078 = vpop.permute.xlu0 %1077
  %1079 = vrot.lane.b32.xlu0 %v1071, 127
  %v1080 = vpop.permute.xlu0 %1079
  %v1081 = vsel %vm232, %v1076, %v1078
  %v1082 = vsel %vm232, %v1078, %v1080
  %1085 = vst [vmem:[#allocation3 + $0xa0] sm:$0xff] %v1081
  %1086 = vst [vmem:[#allocation3 + $0xa8] sm:$0xff] %v1082
  %v1087 = vld [vmem:[%s44 + $0x8] sm:$0xff]
  %v1088 = vld [vmem:[%s44 + $0x10] sm:$0xff]
  %v1089 = vld [vmem:[%s44 + $0x18] sm:$0xff]
  %v1090 = vld [vmem:[%s155] ss:$4 sm:$0x3]
  %v1092 = vperm.slane %v1090, 0
  %v1093 = vperm.slane %v1090, 1
  %1094 = vrot.lane.b32.xlu0 %v1092, 1
  %v1095 = vpop.permute.xlu0 %1094
  %1096 = vrot.lane.b32.xlu0 %v1093, 1
  %v1097 = vpop.permute.xlu0 %1096
  %v1098 = vsel %vm249, %v1095, %v1097
  %v1102 = vmul.f32 %v1087, %v1095
  %v1103 = vmul.f32 %v1088, %v1098
  %v1104 = vmul.f32 %v1089, %v1097
  %1108 = vrot.lane.b32.xlu0 %v1102, 127
  %v1109 = vpop.permute.xlu0 %1108
  %1110 = vrot.lane.b32.xlu0 %v1103, 127
  %v1111 = vpop.permute.xlu0 %1110
  %1112 = vrot.lane.b32.xlu0 %v1104, 127
  %v1113 = vpop.permute.xlu0 %1112
  %v1114 = vsel %vm232, %v1109, %v1111
  %v1115 = vsel %vm232, %v1111, %v1113
  %1118 = vst [vmem:[#allocation3 + $0xb0] sm:$0xff] %v1114
  %1119 = vst [vmem:[#allocation3 + $0xb8] sm:$0xff] %v1115
  %v1120 = vld [vmem:[#allocation2 + $0x8] sm:$0xff]
  %v1121 = vld [vmem:[#allocation2 + $0x10] sm:$0xff]
  %v1122 = vld [vmem:[#allocation2 + $0x18] sm:$0xff]
  %v1123 = vld [vmem:[%s7] ss:$4 sm:$0x3]
  %v1125 = vperm.slane %v1123, 0
  %v1126 = vperm.slane %v1123, 1
  %1127 = vrot.lane.b32.xlu0 %v1125, 15
  %v1128 = vpop.permute.xlu0 %1127
  %1129 = vrot.lane.b32.xlu0 %v1126, 15
  %v1130 = vpop.permute.xlu0 %1129
  %v1131 = vsel %vm181, %v1128, %v1130
  %v1135 = vmul.f32 %v1120, %v1128
  %v1136 = vmul.f32 %v1121, %v1131
  %v1137 = vmul.f32 %v1122, %v1130
  %1141 = vrot.lane.b32.xlu0 %v1135, 113
  %v1142 = vpop.permute.xlu0 %1141
  %1143 = vrot.lane.b32.xlu0 %v1136, 113
  %v1144 = vpop.permute.xlu0 %1143
  %1145 = vrot.lane.b32.xlu0 %v1137, 113
  %v1146 = vpop.permute.xlu0 %1145
  %v1147 = vsel %vm164, %v1142, %v1144
  %v1148 = vsel %vm164, %v1144, %v1146
  %1151 = vst [vmem:[#allocation3 + $0xc0] sm:$0xff] %v1147
  %1152 = vst [vmem:[#allocation3 + $0xc8] sm:$0xff] %v1148
  %v1153 = vld [vmem:[%s44 + $0x8] sm:$0xff]
  %v1154 = vld [vmem:[%s44 + $0x10] sm:$0xff]
  %v1155 = vld [vmem:[%s44 + $0x18] sm:$0xff]
  %v1156 = vld [vmem:[%s7] ss:$4 sm:$0x3]
  %v1158 = vperm.slane %v1156, 0
  %v1159 = vperm.slane %v1156, 1
  %1160 = vrot.lane.b32.xlu0 %v1158, 15
  %v1161 = vpop.permute.xlu0 %1160
  %1162 = vrot.lane.b32.xlu0 %v1159, 15
  %v1163 = vpop.permute.xlu0 %1162
  %v1164 = vsel %vm181, %v1161, %v1163
  %v1168 = vmul.f32 %v1153, %v1161
  %v1169 = vmul.f32 %v1154, %v1164
  %v1170 = vmul.f32 %v1155, %v1163
  %1174 = vrot.lane.b32.xlu0 %v1168, 113
  %v1175 = vpop.permute.xlu0 %1174
  %1176 = vrot.lane.b32.xlu0 %v1169, 113
  %v1177 = vpop.permute.xlu0 %1176
  %1178 = vrot.lane.b32.xlu0 %v1170, 113
  %v1179 = vpop.permute.xlu0 %1178
  %v1180 = vsel %vm164, %v1175, %v1177
  %v1181 = vsel %vm164, %v1177, %v1179
  %1184 = vst [vmem:[#allocation3 + $0xd0] sm:$0xff] %v1180
  %1185 = vst [vmem:[#allocation3 + $0xd8] sm:$0xff] %v1181
  %v1186 = vld [vmem:[#allocation2 + $0x8] sm:$0xff]
  %v1187 = vld [vmem:[#allocation2 + $0x10] sm:$0xff]
  %v1188 = vld [vmem:[#allocation2 + $0x18] sm:$0xff]
  %1192 = vrot.lane.b32.xlu0 %v1186, 112
  %v1193 = vpop.permute.xlu0 %1192
  %1194 = vrot.lane.b32.xlu0 %v1187, 112
  %v1195 = vpop.permute.xlu0 %1194
  %1196 = vrot.lane.b32.xlu0 %v1188, 112
  %v1197 = vpop.permute.xlu0 %1196
  %v1198 = vsel %vm441, %v1193, %v1195
  %v1199 = vsel %vm441, %v1195, %v1197
  %1202 = vst [vmem:[#allocation3 + $0xe0] sm:$0xff] %v1198
  %1203 = vst [vmem:[#allocation3 + $0xe8] sm:$0xff] %v1199
  %v1204 = vld [vmem:[%s44 + $0x8] sm:$0xff]
  %v1205 = vld [vmem:[%s44 + $0x10] sm:$0xff]
  %v1206 = vld [vmem:[%s44 + $0x18] sm:$0xff]
  %1210 = vrot.lane.b32.xlu0 %v1204, 112
  %v1211 = vpop.permute.xlu0 %1210
  %1212 = vrot.lane.b32.xlu0 %v1205, 112
  %v1213 = vpop.permute.xlu0 %1212
  %1214 = vrot.lane.b32.xlu0 %v1206, 112
  %v1215 = vpop.permute.xlu0 %1214
  %v1216 = vsel %vm441, %v1211, %v1213
  %v1217 = vsel %vm441, %v1213, %v1215
  %1220 = vst [vmem:[#allocation3 + $0xf0] sm:$0xff] %v1216
  %1221 = vst [vmem:[#allocation3 + $0xf8] sm:$0xff] %v1217
  %v1222 = vld [vmem:[#allocation2 + $0x8] sm:$0xff]
  %v1223 = vld [vmem:[#allocation2 + $0x10] sm:$0xff]
  %v1224 = vld [vmem:[#allocation2 + $0x18] sm:$0xff]
  %v1225 = vld [vmem:[%s155] ss:$4 sm:$0x3]
  %v1227 = vperm.slane %v1225, 0
  %v1228 = vperm.slane %v1225, 1
  %1229 = vrot.lane.b32.xlu0 %v1227, 17
  %v1230 = vpop.permute.xlu0 %1229
  %1231 = vrot.lane.b32.xlu0 %v1228, 17
  %v1232 = vpop.permute.xlu0 %1231
  %v1233 = vsel %vm75, %v1230, %v1232
  %v1237 = vmul.f32 %v1222, %v1230
  %v1238 = vmul.f32 %v1223, %v1233
  %v1239 = vmul.f32 %v1224, %v1232
  %1243 = vrot.lane.b32.xlu0 %v1237, 111
  %v1244 = vpop.permute.xlu0 %1243
  %1245 = vrot.lane.b32.xlu0 %v1238, 111
  %v1246 = vpop.permute.xlu0 %1245
  %1247 = vrot.lane.b32.xlu0 %v1239, 111
  %v1248 = vpop.permute.xlu0 %1247
  %v1249 = vsel %vm58, %v1244, %v1246
  %v1250 = vsel %vm58, %v1246, %v1248
  %1253 = vst [vmem:[#allocation3 + $0x100] sm:$0xff] %v1249
  %1254 = vst [vmem:[#allocation3 + $0x108] sm:$0xff] %v1250
  %v1255 = vld [vmem:[%s44 + $0x8] sm:$0xff]
  %v1256 = vld [vmem:[%s44 + $0x10] sm:$0xff]
  %v1257 = vld [vmem:[%s44 + $0x18] sm:$0xff]
  %v1258 = vld [vmem:[%s155] ss:$4 sm:$0x3]
  %v1260 = vperm.slane %v1258, 0
  %v1261 = vperm.slane %v1258, 1
  %1262 = vrot.lane.b32.xlu0 %v1260, 17
  %v1263 = vpop.permute.xlu0 %1262
  %1264 = vrot.lane.b32.xlu0 %v1261, 17
  %v1265 = vpop.permute.xlu0 %1264
  %v1266 = vsel %vm75, %v1263, %v1265
  %v1270 = vmul.f32 %v1255, %v1263
  %v1271 = vmul.f32 %v1256, %v1266
  %v1272 = vmul.f32 %v1257, %v1265
  %1276 = vrot.lane.b32.xlu0 %v1270, 111
  %v1277 = vpop.permute.xlu0 %1276
  %1278 = vrot.lane.b32.xlu0 %v1271, 111
  %v1279 = vpop.permute.xlu0 %1278
  %1280 = vrot.lane.b32.xlu0 %v1272, 111
  %v1281 = vpop.permute.xlu0 %1280
  %v1282 = vsel %vm58, %v1277, %v1279
  %v1283 = vsel %vm58, %v1279, %v1281
  %1286 = vst [vmem:[#allocation3 + $0x110] sm:$0xff] %v1282
  %1287 = vst [vmem:[#allocation3 + $0x118] sm:$0xff] %v1283
  %v1288 = vld [vmem:[%s4] sm:$0xff]
  %v1289 = vld [vmem:[#allocation3] sm:$0xff]
  %v1290 = vld [vmem:[#allocation3 + $0x8] sm:$0xff]
  %v1291 = vld [vmem:[#allocation3 + $0x10] sm:$0xff]
  %v1292 = vld [vmem:[#allocation3 + $0x18] sm:$0xff]
  %v1293 = vld [vmem:[#allocation3 + $0x20] sm:$0xff]
  %v1294 = vld [vmem:[#allocation3 + $0x28] sm:$0xff]
  %v1295 = vld [vmem:[#allocation3 + $0x30] sm:$0xff]
  %v1296 = vld [vmem:[#allocation3 + $0x38] sm:$0xff]
  %v1297 = vld [vmem:[#allocation3 + $0x40] sm:$0xff]
  %v1298 = vld [vmem:[#allocation3 + $0x48] sm:$0xff]
  %v1299 = vld [vmem:[#allocation3 + $0x50] sm:$0xff]
  %v1300 = vld [vmem:[#allocation3 + $0x58] sm:$0xff]
  %v1301 = vld [vmem:[#allocation3 + $0x60] sm:$0xff]
  %v1302 = vld [vmem:[#allocation3 + $0x68] sm:$0xff]
  %v1303 = vld [vmem:[#allocation3 + $0x70] sm:$0xff]
  %v1304 = vld [vmem:[#allocation3 + $0x78] sm:$0xff]
  %v1305 = vld [vmem:[#allocation3 + $0x80] sm:$0xff]
  %v1306 = vld [vmem:[#allocation3 + $0x88] sm:$0xff]
  %v1307 = vld [vmem:[#allocation3 + $0x90] sm:$0xff]
  %v1308 = vld [vmem:[#allocation3 + $0x98] sm:$0xff]
  %v1309 = vld [vmem:[#allocation3 + $0xa0] sm:$0xff]
  %v1310 = vld [vmem:[#allocation3 + $0xa8] sm:$0xff]
  %v1311 = vld [vmem:[#allocation3 + $0xb0] sm:$0xff]
  %v1312 = vld [vmem:[#allocation3 + $0xb8] sm:$0xff]
  %v1313 = vld [vmem:[#allocation3 + $0xc0] sm:$0xff]
  %v1314 = vld [vmem:[#allocation3 + $0xc8] sm:$0xff]
  %v1315 = vld [vmem:[#allocation3 + $0xd0] sm:$0xff]
  %v1316 = vld [vmem:[#allocation3 + $0xd8] sm:$0xff]
  %v1317 = vld [vmem:[#allocation3 + $0xe0] sm:$0xff]
  %v1318 = vld [vmem:[#allocation3 + $0xe8] sm:$0xff]
  %v1319 = vld [vmem:[#allocation3 + $0xf0] sm:$0xff]
  %v1320 = vld [vmem:[#allocation3 + $0xf8] sm:$0xff]
  %v1321 = vld [vmem:[#allocation3 + $0x100] sm:$0xff]
  %v1322 = vld [vmem:[#allocation3 + $0x108] sm:$0xff]
  %v1323 = vld [vmem:[#allocation3 + $0x110] sm:$0xff]
  %v1324 = vld [vmem:[#allocation3 + $0x118] sm:$0xff]
  %v1326 = vsel %vm569, %v1288, 0
  %1328 = vmatpush.msra.mxu0 0.0
  %1329 = vmatpush.msra.mxu0 0.0
  %1330 = vmatpush.msra.mxu0 0.0
  %1331 = vmatpush.msra.mxu0 0.0
  %1332 = vmatpush.msra.mxu0 0.0
  %1333 = vmatpush.msra.mxu0 0.0
  %1334 = vmatpush.msra.mxu0 0.0
  %1335 = vmatpush.msra.mxu0 %v1321
  %1336 = vmatpush.msra.mxu0 %v1317
  %1337 = vmatpush.msra.mxu0 %v1313
  %1338 = vmatpush.msra.mxu0 %v1309
  %1339 = vmatpush.msra.mxu0 %v1305
  %1340 = vmatpush.msra.mxu0 %v1301
  %1341 = vmatpush.msra.mxu0 %v1297
  %1342 = vmatpush.msra.mxu0 %v1293
  %1343 = vmatpush.msra.mxu0 %v1289
  %1344 = vmatmul.f32.gmra.mxu0 %v1326
  %v1345 = vpop.f32.mrf.mxu0
  %v1346 = vadd.f32 0.0, %v1345
  %1347 = vdwg.mxu0
  %1348 = vmatpush.msra.mxu0 0.0
  %1349 = vmatpush.msra.mxu0 0.0
  %1350 = vmatpush.msra.mxu0 0.0
  %1351 = vmatpush.msra.mxu0 0.0
  %1352 = vmatpush.msra.mxu0 0.0
  %1353 = vmatpush.msra.mxu0 0.0
  %1354 = vmatpush.msra.mxu0 0.0
  %1355 = vmatpush.msra.mxu0 %v1322
  %1356 = vmatpush.msra.mxu0 %v1318
  %1357 = vmatpush.msra.mxu0 %v1314
  %1358 = vmatpush.msra.mxu0 %v1310
  %1359 = vmatpush.msra.mxu0 %v1306
  %1360 = vmatpush.msra.mxu0 %v1302
  %1361 = vmatpush.msra.mxu0 %v1298
  %1362 = vmatpush.msra.mxu0 %v1294
  %1363 = vmatpush.msra.mxu0 %v1290
  %1364 = vmatmul.f32.gmra.mxu0 %v1326
  %v1365 = vpop.f32.mrf.mxu0
  %v1366 = vadd.f32 0.0, %v1365
  %1367 = vdwg.mxu0
  %1368 = vmatpush.msra.mxu0 0.0
  %1369 = vmatpush.msra.mxu0 0.0
  %1370 = vmatpush.msra.mxu0 0.0
  %1371 = vmatpush.msra.mxu0 0.0
  %1372 = vmatpush.msra.mxu0 0.0
  %1373 = vmatpush.msra.mxu0 0.0
  %1374 = vmatpush.msra.mxu0 0.0
  %1375 = vmatpush.msra.mxu0 %v1323
  %1376 = vmatpush.msra.mxu0 %v1319
  %1377 = vmatpush.msra.mxu0 %v1315
  %1378 = vmatpush.msra.mxu0 %v1311
  %1379 = vmatpush.msra.mxu0 %v1307
  %1380 = vmatpush.msra.mxu0 %v1303
  %1381 = vmatpush.msra.mxu0 %v1299
  %1382 = vmatpush.msra.mxu0 %v1295
  %1383 = vmatpush.msra.mxu0 %v1291
  %1384 = vmatmul.f32.gmra.mxu0 %v1326
  %v1385 = vpop.f32.mrf.mxu0
  %v1386 = vadd.f32 0.0, %v1385
  %1387 = vdwg.mxu0
  %1388 = vmatpush.msra.mxu0 0.0
  %1389 = vmatpush.msra.mxu0 0.0
  %1390 = vmatpush.msra.mxu0 0.0
  %1391 = vmatpush.msra.mxu0 0.0
  %1392 = vmatpush.msra.mxu0 0.0
  %1393 = vmatpush.msra.mxu0 0.0
  %1394 = vmatpush.msra.mxu0 0.0
  %1395 = vmatpush.msra.mxu0 %v1324
  %1396 = vmatpush.msra.mxu0 %v1320
  %1397 = vmatpush.msra.mxu0 %v1316
  %1398 = vmatpush.msra.mxu0 %v1312
  %1399 = vmatpush.msra.mxu0 %v1308
  %1400 = vmatpush.msra.mxu0 %v1304
  %1401 = vmatpush.msra.mxu0 %v1300
  %1402 = vmatpush.msra.mxu0 %v1296
  %1403 = vmatpush.msra.mxu0 %v1292
  %1404 = vmatmul.f32.gmra.mxu0 %v1326
  %v1405 = vpop.f32.mrf.mxu0
  %v1406 = vadd.f32 0.0, %v1405
  %1407 = vdwg.mxu0
  %v1408 = vadd.f32 %v1346, %v1366
  %v1409 = vadd.f32 %v1408, %v1386
  %v1410 = vadd.f32 %v1409, %v1406
  %1411 = vadd.xlane.f32.xlu0 %v1410
  %v1412 = vpop.xlane.xlu0 %1411
  %1413 = vst [vmem:[%s8] sm:$0xff] %v1346
  %1414 = vst [vmem:[%s8 + $0x8] sm:$0xff] %v1366
  %s1415 = scalar_lea.vmem %s8, 16
  %1416 = vst [vmem:[%s1415] sm:$0xff] %v1386
  %1417 = vst [vmem:[%s1415 + $0x8] sm:$0xff] %v1406
  %v1418 = vmul.f32 %v1412, 0.001953125
  %v1419 = vld [vmem:[%s8] sm:$0xff]
  %v1420 = vld [vmem:[%s8 + $0x8] sm:$0xff]
  %v1421 = vsub.f32 %v1419, %v1418
  %v1422 = vsub.f32 %v1420, %v1418
  %v1423 = vmul.f32 %v1421, %v1421
  %v1424 = vmul.f32 %v1422, %v1422
  %v1425 = vadd.f32 %v1423, %v1424
  %1426 = vadd.xlane.f32.xlu0 %v1425
  %v1427 = vpop.xlane.xlu0 %1426
  %v1428 = vadd.f32 %v1427, 0.0
  %v1429 = vld [vmem:[%s1415] sm:$0xff]
  %v1430 = vld [vmem:[%s1415 + $0x8] sm:$0xff]
  %v1431 = vsub.f32 %v1429, %v1418
  %v1432 = vsub.f32 %v1430, %v1418
  %v1433 = vmul.f32 %v1431, %v1431
  %v1434 = vmul.f32 %v1432, %v1432
  %v1435 = vadd.f32 %v1433, %v1434
  %1436 = vadd.xlane.f32.xlu0 %v1435
  %v1437 = vpop.xlane.xlu0 %1436
  %v1438 = vadd.f32 %v1428, %v1437
  %v1439 = vmul.f32 %v1438, 0.001953125
  %v1440 = vld [vmem:[%s5] sm:$0xff]
  %v1441 = vadd.f32 %v1439, 1e-05
  %v1442 = vrsqrt.pop %v1441
  %v1443 = vmul.f32 %v1442, %v1441
  %v1444 = vmul.f32 %v1443, %v1442
  %v1445 = vmul.f32 0.5, %v1444
  %v1446 = vsub.f32 1.5, %v1445
  %v1447 = vmul.f32 %v1442, %v1446
  %vm1448 = vweird.f32 %v1441
  %vm1449 = vweird.f32 %v1442
  %vm1450 = vmor %vm1448, %vm1449
  %v1451 = vsel %vm1450, %v1442, %v1447
  %v1452 = vmul.f32 %v1440, %v1451
  %v1453 = vld [vmem:[%s6] sm:$0xff]
  %v1454 = vmul.f32 %v1418, %v1452
  %v1455 = vsub.f32 %v1453, %v1454
  %1457 = vset.pattern.permute.xlu0 0
  %1458 = vperm.xlu0 %1457, %v1452
  %v1459 = vpop.permute.xlu0 %1458
  %v1461 = vmul.f32 %v1419, %v1459
  %v1462 = vmul.f32 %v1420, %v1459
  %1464 = vset.pattern.permute.xlu0 0
  %1465 = vperm.xlu0 %1464, %v1455
  %v1466 = vpop.permute.xlu0 %1465
  %v1468 = vadd.f32 %v1461, %v1466
  %v1469 = vadd.f32 %v1462, %v1466
  %v1470 = vmin.f32 %v1468, 0.0
  %v1471 = vmin.f32 %v1469, 0.0
  %v1472 = vmul.f32 %v1470, 0.5
  %v1473 = vmul.f32 %v1471, 0.5
  %v1474 = vtanh.pop %v1472
  %v1475 = vtanh.pop %v1473
  %v1476 = vmul.f32 %v1474, 2.0
  %v1477 = vmul.f32 %v1475, 2.0
  %v1478 = vsub.f32 1.0, %v1474
  %v1479 = vsub.f32 1.0, %v1475
  %v1480 = vrcp.pop %v1478
  %v1481 = vmul.f32 %v1478, %v1480
  %v1482 = vsub.f32 1.0, %v1481
  %v1483 = vmul.f32 %v1480, %v1482
  %v1484 = vadd.f32 %v1480, %v1483
  %vm1485 = vweird.f32 %v1478
  %vm1486 = vweird.f32 %v1480
  %vm1487 = vmor %vm1485, %vm1486
  %v1488 = vsel %vm1487, %v1480, %v1484
  %v1489 = vand.u32 2147483647, %v1478
  %vm1490 = vcmp.eq.f32.partialorder %v1489, 8.507059e+37
  %v1491 = vand.u32 %v1478, 2147483648
  %v1492 = vor.u32 1.1754944e-38, %v1491
  %v1493 = vsel %vm1490, %v1492, %v1488
  %v1494 = vmul.f32 %v1476, %v1493
  %v1495 = vrcp.pop %v1479
  %v1496 = vmul.f32 %v1479, %v1495
  %v1497 = vsub.f32 1.0, %v1496
  %v1498 = vmul.f32 %v1495, %v1497
  %v1499 = vadd.f32 %v1495, %v1498
  %vm1500 = vweird.f32 %v1479
  %vm1501 = vweird.f32 %v1495
  %vm1502 = vmor %vm1500, %vm1501
  %v1503 = vsel %vm1502, %v1495, %v1499
  %v1504 = vand.u32 2147483647, %v1479
  %vm1505 = vcmp.eq.f32.partialorder %v1504, 8.507059e+37
  %v1506 = vand.u32 %v1479, 2147483648
  %v1507 = vor.u32 1.1754944e-38, %v1506
  %v1508 = vsel %vm1505, %v1507, %v1503
  %v1509 = vmul.f32 %v1477, %v1508
  %vm1510 = vcmp.gt.f32.partialorder %v1468, 0.0
  %vm1511 = vcmp.gt.f32.partialorder %v1469, 0.0
  %v1512 = vsel %vm1510, %v1468, %v1494
  %v1513 = vsel %vm1511, %v1469, %v1509
  %1514 = vst [vmem:[%s8] sm:$0xff] %v1512
  %1515 = vst [vmem:[%s8 + $0x8] sm:$0xff] %v1513
  %v1516 = vld [vmem:[%s1415] sm:$0xff]
  %v1517 = vld [vmem:[%s1415 + $0x8] sm:$0xff]
  %v1518 = vmul.f32 %v1516, %v1459
  %v1519 = vmul.f32 %v1517, %v1459
  %v1520 = vadd.f32 %v1518, %v1466
  %v1521 = vadd.f32 %v1519, %v1466
  %v1522 = vmin.f32 %v1520, 0.0
  %v1523 = vmin.f32 %v1521, 0.0
  %v1524 = vmul.f32 %v1522, 0.5
  %v1525 = vmul.f32 %v1523, 0.5
  %v1526 = vtanh.pop %v1524
  %v1527 = vtanh.pop %v1525
  %v1528 = vmul.f32 %v1526, 2.0
  %v1529 = vmul.f32 %v1527, 2.0
  %v1530 = vsub.f32 1.0, %v1526
  %v1531 = vsub.f32 1.0, %v1527
  %v1532 = vrcp.pop %v1530
  %v1533 = vmul.f32 %v1530, %v1532
  %v1534 = vsub.f32 1.0, %v1533
  %v1535 = vmul.f32 %v1532, %v1534
  %v1536 = vadd.f32 %v1532, %v1535
  %vm1537 = vweird.f32 %v1530
  %vm1538 = vweird.f32 %v1532
  %vm1539 = vmor %vm1537, %vm1538
  %v1540 = vsel %vm1539, %v1532, %v1536
  %v1541 = vand.u32 2147483647, %v1530
  %vm1542 = vcmp.eq.f32.partialorder %v1541, 8.507059e+37
  %v1543 = vand.u32 %v1530, 2147483648
  %v1544 = vor.u32 1.1754944e-38, %v1543
  %v1545 = vsel %vm1542, %v1544, %v1540
  %v1546 = vmul.f32 %v1528, %v1545
  %v1547 = vrcp.pop %v1531
  %v1548 = vmul.f32 %v1531, %v1547
  %v1549 = vsub.f32 1.0, %v1548
  %v1550 = vmul.f32 %v1547, %v1549
  %v1551 = vadd.f32 %v1547, %v1550
  %vm1552 = vweird.f32 %v1531
  %vm1553 = vweird.f32 %v1547
  %vm1554 = vmor %vm1552, %vm1553
  %v1555 = vsel %vm1554, %v1547, %v1551
  %v1556 = vand.u32 2147483647, %v1531
  %vm1557 = vcmp.eq.f32.partialorder %v1556, 8.507059e+37
  %v1558 = vand.u32 %v1531, 2147483648
  %v1559 = vor.u32 1.1754944e-38, %v1558
  %v1560 = vsel %vm1557, %v1559, %v1555
  %v1561 = vmul.f32 %v1529, %v1560
  %vm1562 = vcmp.gt.f32.partialorder %v1520, 0.0
  %vm1563 = vcmp.gt.f32.partialorder %v1521, 0.0
  %v1564 = vsel %vm1562, %v1520, %v1546
  %v1565 = vsel %vm1563, %v1521, %v1561
  %1566 = vst [vmem:[%s1415] sm:$0xff] %v1564
  %1567 = vst [vmem:[%s1415 + $0x8] sm:$0xff] %v1565
  // Predicated region
  $region34: #{basic_block_forward.1} parent=0 // pred_check
    _
  $region35: #{basic_block_forward.1} parent=0 // pred_check_branch
    %1569 = sbr.rel (0) target = $region37
  $region36: #{basic_block_forward.1} parent=0 // pred_region
    _
  $region37: #{basic_block_forward.1} parent=0 // pred_fallthru
    _
  // Predicated region
  $region38: #{basic_block_forward.1} parent=0 // pred_check
    _
  $region39: #{basic_block_forward.1} parent=0 // pred_check_branch
    %1571 = sbr.rel (0) target = $region41
  $region40: #{basic_block_forward.1} parent=0 // pred_region
    _
  $region41: #{basic_block_forward.1} parent=0 // pred_fallthru
    _

</llo_original>
